<compile_context>
chip_gen: v6e
topology: v6e:2x2x1
jax: 0.10.0
libtpu: 0.0.40
codegen_flags: <defaults>
</compile_context>

<pallas_src>
import functools

import jax
import jax.numpy as jnp
from jax import lax
from jax.experimental import pallas as pl
from jax.experimental.pallas import tpu as pltpu


def _round_up(a, m):
    return (a + m - 1) // m * m


# ---------------------------------------------------------------------------
# Fused bottleneck kernel (one grid step == one row band of one image)
# ---------------------------------------------------------------------------

def _bottleneck_kernel(x_ref, w1_ref, b1_ref, w2_ref, b2_ref, w3_ref, b3_ref,
                       o_ref, h1s_ref, h3_ref, *, band, wpad, width, cdtype):
    """conv1(1x1)+bn1+relu -> conv2(3x3,pad1)+bn2+relu -> conv3(1x1)+bn3+res+relu.

    x_ref:   (1, 1, Pb, Cin)  padded-flat band incl. 1-row halo, Pb=(band+2)*wpad, f32
    w1_ref:  (Cin, planes)            BN1 scale pre-folded (compute dtype)
    w2_ref:  (3, 3*planes, planes)    dx taps packed along K per dy (BN2 folded)
    w3_ref:  (planes, Cout)           BN3 scale pre-folded
    b*_ref:  (1, C) f32               folded BN shifts
    o_ref:   (1, 1, M2, Cout)         M2 = band*wpad (pad columns hold junk)
    h1s_ref: (Pb + 16, planes)        conv2 input with 8-row guard bands (aligned store)
    h3_ref:  (Pb, 3*planes)           dx-packed conv2 input (aligned dy slices)
    """
    pb = (band + 2) * wpad
    m2 = band * wpad
    planes = w1_ref.shape[1]
    b = pl.program_id(1)
    nb_last = pl.num_programs(1) - 1

    # ---- conv1 (1x1) + bn1 + relu over the whole padded band (M = Pb) ------
    x = x_ref[0, 0]                                                # (Pb, Cin) f32
    h1 = jnp.dot(x.astype(cdtype), w1_ref[...],
                 preferred_element_type=jnp.float32)
    h1 = jnp.maximum(h1 + b1_ref[...], 0.0)

    # Interior mask built in-kernel (no HBM mask input): spatial zero-padding of
    # conv2's input must be exact zeros (relu(b1) would otherwise leak in).  Pad
    # columns are masked for every band; the top/bottom halo rows only for the
    # first/last band (other halo rows are real rows of the neighbouring band).
    cidx = lax.broadcasted_iota(jnp.int32, (wpad, 1), 0)
    col_ok = jnp.logical_and(cidx >= 1, cidx <= width).astype(jnp.float32)
    keep = jnp.concatenate([col_ok] * (band + 2), axis=0)          # (Pb, 1)
    pidx = lax.broadcasted_iota(jnp.int32, (pb, 1), 0)
    keep = jnp.where(jnp.logical_and(b == 0, pidx < wpad), 0.0, keep)
    keep = jnp.where(jnp.logical_and(b == nb_last, pidx >= pb - wpad), 0.0, keep)
    h1c = (h1 * keep).astype(cdtype)                               # (Pb, planes)

    # ---- pre-pack the three dx taps along lanes (one shuffle pass) ----------
    # h1s holds h1 with zeroed 8-row guard bands; the +/-1 sublane shifts are the
    # only unaligned accesses left and happen once over Pb rows.
    zeros8 = jnp.zeros((8, planes), cdtype)
    h1s_ref[pl.ds(0, 8), :] = zeros8
    h1s_ref[pl.ds(8 + pb, 8), :] = zeros8
    h1s_ref[pl.ds(8, pb), :] = h1c
    h_left = h1s_ref[pl.ds(7, pb), :]       # h1[p-1] (dx = 0 tap)
    h_right = h1s_ref[pl.ds(9, pb), :]      # h1[p+1] (dx = 2 tap)
    h3_ref[...] = jnp.concatenate([h_left, h1c, h_right], axis=-1)

    # ---- conv2 (3x3, pad=1) + bn2 + relu: 3 aligned K=3*planes matmuls ------
    # For output flat position q the dy tap group lives at h3[q + (dy-1)*wpad];
    # with outputs starting at q = wpad this is a slice at dy*wpad (multiple of 8).
    acc = jnp.dot(h3_ref[pl.ds(0, m2), :], w2_ref[0],
                  preferred_element_type=jnp.float32)
    acc = acc + jnp.dot(h3_ref[pl.ds(wpad, m2), :], w2_ref[1],
                        preferred_element_type=jnp.float32)
    acc = acc + jnp.dot(h3_ref[pl.ds(2 * wpad, m2), :], w2_ref[2],
                        preferred_element_type=jnp.float32)
    h2 = jnp.maximum(acc + b2_ref[...], 0.0)                       # (M2, planes) f32

    # ---- conv3 (1x1) + bn3 + residual + relu --------------------------------
    y = jnp.dot(h2.astype(cdtype), w3_ref[...],
                preferred_element_type=jnp.float32)
    # Residual = original interior rows of the band, same flat layout, f32, aligned.
    res = x_ref[0, 0, pl.ds(wpad, m2), :]
    y = y + b3_ref[...] + res
    o_ref[0, 0] = jnp.maximum(y, 0.0).astype(o_ref.dtype)


# ---------------------------------------------------------------------------
# Wrapper
# ---------------------------------------------------------------------------

def fold_bn(p, eps=1e-5):
    scale = p["gamma"] / jnp.sqrt(p["var"] + eps)
    shift = p["beta"] - p["mean"] * scale
    return scale, shift


def bottleneck_forward(x_nchw, params, compute_dtype=jnp.float32, band_rows=None):
    """Fused Bottleneck forward.  compute_dtype=bf16 -> bf16 MXU operands + bf16
    output writeback, f32 accumulation / epilogue / residual."""
    x = jnp.transpose(x_nchw, (0, 2, 3, 1)).astype(jnp.float32)    # NCHW -> NHWC
    n, h, w, c_in = x.shape
    planes = params["w1"].shape[1]
    c_out = params["w3"].shape[1]
    assert c_out == c_in, "identity residual requires inplanes == planes*expansion"

    wpad = _round_up(w + 2, 8)            # sublane-aligned flat row pitch

    # Row-band size (rows of output per grid step); must divide H.
    if band_rows is None:
        band_rows = max(1, min(h, 256 // wpad))
    band_rows = max(1, min(band_rows, h))
    while h % band_rows:
        band_rows -= 1
    nb = h // band_rows
    pb = (band_rows + 2) * wpad           # padded-flat positions per band (with halo)
    m2 = band_rows * wpad                 # computed output positions per band

    s1, b1 = fold_bn(params["bn1"])
    s2, b2 = fold_bn(params["bn2"])
    s3, b3 = fold_bn(params["bn3"])

    # Fold BN scales into the conv weights (kernel epilogue = add + relu).
    w1f = (params["w1"] * s1[None, :]).astype(compute_dtype)                 # (Cin, planes)
    w2p = (params["w2"] * s2[None, None, None, :]).reshape(
        3, 3 * planes, planes).astype(compute_dtype)                         # dx packed along K
    w3f = (params["w3"] * s3[None, :]).astype(compute_dtype)                 # (planes, Cout)

    # Pad H by 1/1, W by 1 left and (wpad - w - 1) right, then gather overlapping
    # row bands (1-row halo each side).  x stays f32 so the residual is exact.
    xp = jnp.pad(x, ((0, 0), (1, 1), (1, wpad - w - 1), (0, 0)))
    row_idx = jnp.arange(nb)[:, None] * band_rows + jnp.arange(band_rows + 2)[None, :]
    xb = xp[:, row_idx].reshape(n, nb, pb, c_in)

    out_dtype = compute_dtype
    csz = jnp.dtype(compute_dtype).itemsize
    osz = jnp.dtype(out_dtype).itemsize

    flops = 2 * n * nb * (pb * c_in * planes
                          + 3 * m2 * 3 * planes * planes
                          + m2 * planes * c_out)
    bytes_accessed = (xb.size * 4 + n * nb * m2 * c_out * osz
                      + (w1f.size + w2p.size + w3f.size) * csz)

    # VMEM budget: double-buffered x/out blocks + (possibly double-buffered) weights
    # + scratches + f32 live intermediates; cap at 40 MiB for v7x's 64 MiB VMEM.
    vmem_est = (2 * (pb * c_in * 4 + m2 * c_out * osz)
                + 2 * (w1f.size + w2p.size + w3f.size) * csz
                + (pb + 16) * planes * csz + pb * 3 * planes * csz
                + pb * planes * (4 + csz) + 2 * m2 * planes * 4 + m2 * c_out * 4)
    vmem_limit = int(min(40 * 1024 * 1024, max(16 * 1024 * 1024, 2 * vmem_est)))

    kernel = functools.partial(_bottleneck_kernel, band=band_rows, wpad=wpad,
                               width=w, cdtype=compute_dtype)

    out_flat = pl.pallas_call(
        kernel,
        grid=(n, nb),
        in_specs=[
            pl.BlockSpec((1, 1, pb, c_in), lambda i, j: (i, j, 0, 0)),        # x band
            pl.BlockSpec((c_in, planes), lambda i, j: (0, 0)),                # w1*s1
            pl.BlockSpec((1, planes), lambda i, j: (0, 0)),                   # b1
            pl.BlockSpec((3, 3 * planes, planes), lambda i, j: (0, 0, 0)),    # w2*s2
            pl.BlockSpec((1, planes), lambda i, j: (0, 0)),                   # b2
            pl.BlockSpec((planes, c_out), lambda i, j: (0, 0)),               # w3*s3
            pl.BlockSpec((1, c_out), lambda i, j: (0, 0)),                    # b3
        ],
        out_specs=pl.BlockSpec((1, 1, m2, c_out), lambda i, j: (i, j, 0, 0)),
        out_shape=jax.ShapeDtypeStruct((n, nb, m2, c_out), out_dtype),
        scratch_shapes=[pltpu.VMEM((pb + 16, planes), compute_dtype),
                        pltpu.VMEM((pb, 3 * planes), compute_dtype)],
        compiler_params=pltpu.CompilerParams(
            dimension_semantics=("parallel", "parallel"),
            vmem_limit_bytes=vmem_limit),
        cost_estimate=pl.CostEstimate(flops=flops, transcendentals=0,
                                      bytes_accessed=bytes_accessed),
    )(xb, w1f, b1.reshape(1, planes).astype(jnp.float32),
      w2p, b2.reshape(1, planes).astype(jnp.float32),
      w3f, b3.reshape(1, c_out).astype(jnp.float32))

    out = out_flat.reshape(n, h, wpad, c_out)[:, :, 1:w + 1, :]    # drop pad columns
    return jnp.transpose(out, (0, 3, 1, 2)).astype(x_nchw.dtype)   # NHWC -> NCHW


# ---------------------------------------------------------------------------
# Pure-JAX reference and parameter init
# ---------------------------------------------------------------------------

def reference_forward(x_nchw, params, eps=1e-5):
    x = jnp.transpose(x_nchw, (0, 2, 3, 1))
    dn = ("NHWC", "HWIO", "NHWC")

    def bn(y, p):
        s = p["gamma"] / jnp.sqrt(p["var"] + eps)
        return y * s + (p["beta"] - p["mean"] * s)

    out = lax.conv_general_dilated(x, params["w1"][None, None], (1, 1),
                                   "VALID", dimension_numbers=dn)
    out = jax.nn.relu(bn(out, params["bn1"]))
    out = lax.conv_general_dilated(out, params["w2"], (1, 1),
                                   [(1, 1), (1, 1)], dimension_numbers=dn)
    out = jax.nn.relu(bn(out, params["bn2"]))
    out = lax.conv_general_dilated(out, params["w3"][None, None], (1, 1),
                                   "VALID", dimension_numbers=dn)
    out = bn(out, params["bn3"]) + x
    out = jax.nn.relu(out)
    return jnp.transpose(out, (0, 3, 1, 2))


def init_params(key, inplanes, planes, expansion=4):
    ks = jax.random.split(key, 6)
    outplanes = planes * expansion

    def bn_params(k, c):
        k1, k2, k3, k4 = jax.random.split(k, 4)
        return dict(
            gamma=jax.random.uniform(k1, (c,), jnp.float32, 0.5, 1.5),
            beta=jax.random.normal(k2, (c,), jnp.float32) * 0.1,
            mean=jax.random.normal(k3, (c,), jnp.float32) * 0.1,
            var=jax.random.uniform(k4, (c,), jnp.float32, 0.5, 1.5),
        )

    return dict(
        w1=jax.random.normal(ks[0], (inplanes, planes), jnp.float32) * 0.2,
        w2=jax.random.normal(ks[1], (3, 3, planes, planes), jnp.float32) * 0.2,
        w3=jax.random.normal(ks[2], (planes, outplanes), jnp.float32) * 0.2,
        bn1=bn_params(ks[3], planes),
        bn2=bn_params(ks[4], planes),
        bn3=bn_params(ks[5], outplanes),
    )


if __name__ == "__main__":
    key = jax.random.PRNGKey(0)
    k_x, k_p = jax.random.split(key)

    # Identity residual requires inplanes == planes * expansion (downsample=None).
    N, inplanes, H, W = 2, 16, 16, 16
    planes = 4

    x_nchw = jax.random.normal(k_x, (N, inplanes, H, W), jnp.float32)
    params = init_params(k_p, inplanes, planes)

    ref = jax.block_until_ready(reference_forward(x_nchw, params))

    # f32 path, default banding (2 row bands) — exactness check vs XLA conv reference.
    out = jax.block_until_ready(bottleneck_forward(x_nchw, params, jnp.float32))
    assert out.shape == (N, inplanes, H, W), out.shape
    assert jnp.allclose(out, ref, atol=1e-3, rtol=1e-3), (
        float(jnp.max(jnp.abs(out - ref))))

    # f32 path, single band (first band == last band mask edge case).
    out1 = jax.block_until_ready(
        bottleneck_forward(x_nchw, params, jnp.float32, band_rows=H))
    assert jnp.allclose(out1, ref, atol=1e-3, rtol=1e-3), (
        float(jnp.max(jnp.abs(out1 - ref))))

    # bf16 MXU operands + bf16 writeback (f32 accumulate/residual/epilogue).
    out_bf16 = jax.block_until_ready(
        bottleneck_forward(x_nchw, params, jnp.bfloat16))
    assert jnp.allclose(out_bf16, ref, atol=1.5e-1, rtol=1e-1), (
        float(jnp.max(jnp.abs(out_bf16 - ref))))

    print("KERNEL_OK")
</pallas_src>

<mosaic_0001>
module attributes {stable_mosaic.version = 11 : i64} {
  func.func @_bottleneck_kernel(%arg0: i32, %arg1: i32, %arg2: memref<1x1x240x16xf32, #tpu.memory_space<vmem>>, %arg3: memref<16x4xf32, #tpu.memory_space<vmem>>, %arg4: memref<1x4xf32, #tpu.memory_space<vmem>>, %arg5: memref<3x12x4xf32, #tpu.memory_space<vmem>>, %arg6: memref<1x4xf32, #tpu.memory_space<vmem>>, %arg7: memref<4x16xf32, #tpu.memory_space<vmem>>, %arg8: memref<1x16xf32, #tpu.memory_space<vmem>>, %arg9: memref<1x1x192x16xf32, #tpu.memory_space<vmem>>, %arg10: memref<256x4xf32, #tpu.memory_space<vmem>>, %arg11: memref<240x12xf32, #tpu.memory_space<vmem>>) attributes {dimension_semantics = [#tpu.dimension_semantics<parallel>, #tpu.dimension_semantics<parallel>], iteration_bounds = array<i64: 2, 2>, scalar_prefetch = 0 : i64, scratch_operands = 2 : i64, tpu.core_type = #tpu.core_type<tc>, window_params = [{transform_indices = @transform_0, window_bounds = array<i64: 1, 1, 240, 16>}, {pipeline_mode = #tpu.pipeline_mode<synchronous>, transform_indices = @transform_1, window_bounds = array<i64: 16, 4>}, {pipeline_mode = #tpu.pipeline_mode<synchronous>, transform_indices = @transform_2, window_bounds = array<i64: 1, 4>}, {pipeline_mode = #tpu.pipeline_mode<synchronous>, transform_indices = @transform_3, window_bounds = array<i64: 3, 12, 4>}, {pipeline_mode = #tpu.pipeline_mode<synchronous>, transform_indices = @transform_4, window_bounds = array<i64: 1, 4>}, {pipeline_mode = #tpu.pipeline_mode<synchronous>, transform_indices = @transform_5, window_bounds = array<i64: 4, 16>}, {pipeline_mode = #tpu.pipeline_mode<synchronous>, transform_indices = @transform_6, window_bounds = array<i64: 1, 16>}, {transform_indices = @transform_7, window_bounds = array<i64: 1, 1, 192, 16>}]} {
    %c0 = arith.constant 0 : index
    %c0_0 = arith.constant 0 : index
    %c0_1 = arith.constant 0 : index
    %c0_2 = arith.constant 0 : index
    %0 = vector.load %arg2[%c0, %c0_0, %c0_1, %c0_2] : memref<1x1x240x16xf32, #tpu.memory_space<vmem>>, vector<1x1x240x16xf32>
    %1 = vector.shape_cast %0 : vector<1x1x240x16xf32> to vector<240x16xf32>
    %c0_3 = arith.constant 0 : index
    %c0_4 = arith.constant 0 : index
    %2 = vector.load %arg3[%c0_3, %c0_4] : memref<16x4xf32, #tpu.memory_space<vmem>>, vector<16x4xf32>
    %cst = arith.constant dense<0.000000e+00> : vector<240x4xf32>
    %3 = tpu.matmul %1, %2, %cst {dimension_numbers = #tpu.dot_dimension_numbers<[1], [0], [0], [1], [0, 0, 1, 1], [], []>} : vector<240x16xf32>, vector<16x4xf32>, vector<240x4xf32> -> vector<240x4xf32>
    %c0_5 = arith.constant 0 : index
    %c0_6 = arith.constant 0 : index
    %4 = vector.load %arg4[%c0_5, %c0_6] : memref<1x4xf32, #tpu.memory_space<vmem>>, vector<1x4xf32>
    %5 = vector.broadcast %4 : vector<1x4xf32> to vector<240x4xf32>
    %6 = arith.addf %3, %5 : vector<240x4xf32>
    %cst_7 = arith.constant 0.000000e+00 : f32
    %7 = vector.broadcast %cst_7 : f32 to vector<240x4xf32>
    %8 = arith.maximumf %6, %7 : vector<240x4xf32>
    %9 = tpu.iota {dimensions = array<i32: 0>} : vector<24x1xi32>
    %c1_i32 = arith.constant 1 : i32
    %10 = vector.broadcast %c1_i32 : i32 to vector<24x1xi32>
    %11 = arith.cmpi sge, %9, %10 : vector<24x1xi32>
    %c16_i32 = arith.constant 16 : i32
    %12 = vector.broadcast %c16_i32 : i32 to vector<24x1xi32>
    %13 = arith.cmpi sle, %9, %12 : vector<24x1xi32>
    %14 = arith.andi %11, %13 : vector<24x1xi1>
    %15 = arith.extui %14 : vector<24x1xi1> to vector<24x1xi32>
    %16 = arith.sitofp %15 : vector<24x1xi32> to vector<24x1xf32>
    %17 = tpu.concatenate %16, %16, %16, %16, %16, %16, %16, %16, %16, %16 in 0 : vector<24x1xf32>, vector<24x1xf32>, vector<24x1xf32>, vector<24x1xf32>, vector<24x1xf32>, vector<24x1xf32>, vector<24x1xf32>, vector<24x1xf32>, vector<24x1xf32>, vector<24x1xf32> -> vector<240x1xf32>
    %18 = tpu.iota {dimensions = array<i32: 0>} : vector<240x1xi32>
    %c0_i32 = arith.constant 0 : i32
    %19 = arith.cmpi eq, %arg1, %c0_i32 : i32
    %c24_i32 = arith.constant 24 : i32
    %20 = vector.broadcast %c24_i32 : i32 to vector<240x1xi32>
    %21 = arith.cmpi slt, %18, %20 : vector<240x1xi32>
    %22 = vector.broadcast %19 : i1 to vector<240x1xi1>
    %23 = arith.andi %22, %21 : vector<240x1xi1>
    %cst_8 = arith.constant 0.000000e+00 : f32
    %24 = vector.broadcast %cst_8 : f32 to vector<240x1xf32>
    %25 = arith.select %23, %24, %17 : vector<240x1xi1>, vector<240x1xf32>
    %c1_i32_9 = arith.constant 1 : i32
    %26 = arith.cmpi eq, %arg1, %c1_i32_9 : i32
    %c216_i32 = arith.constant 216 : i32
    %27 = vector.broadcast %c216_i32 : i32 to vector<240x1xi32>
    %28 = arith.cmpi sge, %18, %27 : vector<240x1xi32>
    %29 = vector.broadcast %26 : i1 to vector<240x1xi1>
    %30 = arith.andi %29, %28 : vector<240x1xi1>
    %cst_10 = arith.constant 0.000000e+00 : f32
    %31 = vector.broadcast %cst_10 : f32 to vector<240x1xf32>
    %32 = arith.select %30, %31, %25 : vector<240x1xi1>, vector<240x1xf32>
    %33 = vector.broadcast %32 : vector<240x1xf32> to vector<240x4xf32>
    %34 = arith.mulf %8, %33 : vector<240x4xf32>
    %cst_11 = arith.constant 0.000000e+00 : f32
    %35 = vector.broadcast %cst_11 : f32 to vector<8x4xf32>
    %c0_12 = arith.constant 0 : index
    %c0_13 = arith.constant 0 : index
    %36 = vector.load %arg10[%c0_12, %c0_13] : memref<256x4xf32, #tpu.memory_space<vmem>>, vector<8x4xf32>
    tpu.vector_store %arg10[%c0_12, %c0_13], %35 {strides = array<i32>} : memref<256x4xf32, #tpu.memory_space<vmem>>, vector<8x4xf32>,
    %c248 = arith.constant 248 : index
    %c0_14 = arith.constant 0 : index
    %37 = vector.load %arg10[%c248, %c0_14] : memref<256x4xf32, #tpu.memory_space<vmem>>, vector<8x4xf32>
    tpu.vector_store %arg10[%c248, %c0_14], %35 {strides = array<i32>} : memref<256x4xf32, #tpu.memory_space<vmem>>, vector<8x4xf32>,
    %c8 = arith.constant 8 : index
    %c0_15 = arith.constant 0 : index
    %38 = vector.load %arg10[%c8, %c0_15] : memref<256x4xf32, #tpu.memory_space<vmem>>, vector<240x4xf32>
    tpu.vector_store %arg10[%c8, %c0_15], %34 {strides = array<i32>} : memref<256x4xf32, #tpu.memory_space<vmem>>, vector<240x4xf32>,
    %c7 = arith.constant 7 : index
    %c0_16 = arith.constant 0 : index
    %39 = vector.load %arg10[%c7, %c0_16] : memref<256x4xf32, #tpu.memory_space<vmem>>, vector<240x4xf32>
    %c9 = arith.constant 9 : index
    %c0_17 = arith.constant 0 : index
    %40 = vector.load %arg10[%c9, %c0_17] : memref<256x4xf32, #tpu.memory_space<vmem>>, vector<240x4xf32>
    %41 = tpu.concatenate %39, %34, %40 in 1 : vector<240x4xf32>, vector<240x4xf32>, vector<240x4xf32> -> vector<240x12xf32>
    %c0_18 = arith.constant 0 : index
    %c0_19 = arith.constant 0 : index
    %42 = vector.load %arg11[%c0_18, %c0_19] : memref<240x12xf32, #tpu.memory_space<vmem>>, vector<240x12xf32>
    tpu.vector_store %arg11[%c0_18, %c0_19], %41 {strides = array<i32>} : memref<240x12xf32, #tpu.memory_space<vmem>>, vector<240x12xf32>,
    %c0_20 = arith.constant 0 : index
    %c0_21 = arith.constant 0 : index
    %43 = vector.load %arg11[%c0_20, %c0_21] : memref<240x12xf32, #tpu.memory_space<vmem>>, vector<192x12xf32>
    %c0_22 = arith.constant 0 : index
    %c0_23 = arith.constant 0 : index
    %c0_24 = arith.constant 0 : index
    %44 = vector.load %arg5[%c0_22, %c0_23, %c0_24] : memref<3x12x4xf32, #tpu.memory_space<vmem>>, vector<1x12x4xf32>
    %45 = vector.shape_cast %44 : vector<1x12x4xf32> to vector<12x4xf32>
    %cst_25 = arith.constant dense<0.000000e+00> : vector<192x4xf32>
    %46 = tpu.matmul %43, %45, %cst_25 {dimension_numbers = #tpu.dot_dimension_numbers<[1], [0], [0], [1], [0, 0, 1, 1], [], []>} : vector<192x12xf32>, vector<12x4xf32>, vector<192x4xf32> -> vector<192x4xf32>
    %c24 = arith.constant 24 : index
    %c0_26 = arith.constant 0 : index
    %47 = vector.load %arg11[%c24, %c0_26] : memref<240x12xf32, #tpu.memory_space<vmem>>, vector<192x12xf32>
    %c1 = arith.constant 1 : index
    %c0_27 = arith.constant 0 : index
    %c0_28 = arith.constant 0 : index
    %48 = vector.load %arg5[%c1, %c0_27, %c0_28] : memref<3x12x4xf32, #tpu.memory_space<vmem>>, vector<1x12x4xf32>
    %49 = vector.shape_cast %48 : vector<1x12x4xf32> to vector<12x4xf32>
    %cst_29 = arith.constant dense<0.000000e+00> : vector<192x4xf32>
    %50 = tpu.matmul %47, %49, %cst_29 {dimension_numbers = #tpu.dot_dimension_numbers<[1], [0], [0], [1], [0, 0, 1, 1], [], []>} : vector<192x12xf32>, vector<12x4xf32>, vector<192x4xf32> -> vector<192x4xf32>
    %51 = arith.addf %46, %50 : vector<192x4xf32>
    %c48 = arith.constant 48 : index
    %c0_30 = arith.constant 0 : index
    %52 = vector.load %arg11[%c48, %c0_30] : memref<240x12xf32, #tpu.memory_space<vmem>>, vector<192x12xf32>
    %c2 = arith.constant 2 : index
    %c0_31 = arith.constant 0 : index
    %c0_32 = arith.constant 0 : index
    %53 = vector.load %arg5[%c2, %c0_31, %c0_32] : memref<3x12x4xf32, #tpu.memory_space<vmem>>, vector<1x12x4xf32>
    %54 = vector.shape_cast %53 : vector<1x12x4xf32> to vector<12x4xf32>
    %cst_33 = arith.constant dense<0.000000e+00> : vector<192x4xf32>
    %55 = tpu.matmul %52, %54, %cst_33 {dimension_numbers = #tpu.dot_dimension_numbers<[1], [0], [0], [1], [0, 0, 1, 1], [], []>} : vector<192x12xf32>, vector<12x4xf32>, vector<192x4xf32> -> vector<192x4xf32>
    %56 = arith.addf %51, %55 : vector<192x4xf32>
    %c0_34 = arith.constant 0 : index
    %c0_35 = arith.constant 0 : index
    %57 = vector.load %arg6[%c0_34, %c0_35] : memref<1x4xf32, #tpu.memory_space<vmem>>, vector<1x4xf32>
    %58 = vector.broadcast %57 : vector<1x4xf32> to vector<192x4xf32>
    %59 = arith.addf %56, %58 : vector<192x4xf32>
    %cst_36 = arith.constant 0.000000e+00 : f32
    %60 = vector.broadcast %cst_36 : f32 to vector<192x4xf32>
    %61 = arith.maximumf %59, %60 : vector<192x4xf32>
    %c0_37 = arith.constant 0 : index
    %c0_38 = arith.constant 0 : index
    %62 = vector.load %arg7[%c0_37, %c0_38] : memref<4x16xf32, #tpu.memory_space<vmem>>, vector<4x16xf32>
    %cst_39 = arith.constant dense<0.000000e+00> : vector<192x16xf32>
    %63 = tpu.matmul %61, %62, %cst_39 {dimension_numbers = #tpu.dot_dimension_numbers<[1], [0], [0], [1], [0, 0, 1, 1], [], []>} : vector<192x4xf32>, vector<4x16xf32>, vector<192x16xf32> -> vector<192x16xf32>
    %c0_40 = arith.constant 0 : index
    %c0_41 = arith.constant 0 : index
    %c24_42 = arith.constant 24 : index
    %c0_43 = arith.constant 0 : index
    %64 = vector.load %arg2[%c0_40, %c0_41, %c24_42, %c0_43] : memref<1x1x240x16xf32, #tpu.memory_space<vmem>>, vector<1x1x192x16xf32>
    %65 = vector.shape_cast %64 : vector<1x1x192x16xf32> to vector<192x16xf32>
    %c0_44 = arith.constant 0 : index
    %c0_45 = arith.constant 0 : index
    %66 = vector.load %arg8[%c0_44, %c0_45] : memref<1x16xf32, #tpu.memory_space<vmem>>, vector<1x16xf32>
    %67 = vector.broadcast %66 : vector<1x16xf32> to vector<192x16xf32>
    %68 = arith.addf %63, %67 : vector<192x16xf32>
    %69 = arith.addf %68, %65 : vector<192x16xf32>
    %cst_46 = arith.constant 0.000000e+00 : f32
    %70 = vector.broadcast %cst_46 : f32 to vector<192x16xf32>
    %71 = arith.maximumf %69, %70 : vector<192x16xf32>
    %c0_47 = arith.constant 0 : index
    %c0_48 = arith.constant 0 : index
    %c0_49 = arith.constant 0 : index
    %c0_50 = arith.constant 0 : index
    %72 = vector.load %arg9[%c0_47, %c0_48, %c0_49, %c0_50] : memref<1x1x192x16xf32, #tpu.memory_space<vmem>>, vector<1x1x192x16xf32>
    %73 = vector.shape_cast %72 : vector<1x1x192x16xf32> to vector<192x16xf32>
    %74 = vector.shape_cast %71 : vector<192x16xf32> to vector<1x1x192x16xf32>
    tpu.vector_store %arg9[%c0_47, %c0_48, %c0_49, %c0_50], %74 {strides = array<i32>} : memref<1x1x192x16xf32, #tpu.memory_space<vmem>>, vector<1x1x192x16xf32>,
    return
  }
  func.func @transform_0(%arg0: i32, %arg1: i32) -> (i32, i32, i32, i32) {
    %c0_i32 = arith.constant 0 : i32
    %c0_i32_0 = arith.constant 0 : i32
    %c0_i32_1 = arith.constant 0 : i32
    return %arg0, %arg1, %c0_i32, %c0_i32_0 : i32, i32, i32, i32
  }
  func.func @transform_1(%arg0: i32, %arg1: i32) -> (i32, i32) {
    %c0_i32 = arith.constant 0 : i32
    %c0_i32_0 = arith.constant 0 : i32
    %c0_i32_1 = arith.constant 0 : i32
    return %c0_i32, %c0_i32_0 : i32, i32
  }
  func.func @transform_2(%arg0: i32, %arg1: i32) -> (i32, i32) {
    %c0_i32 = arith.constant 0 : i32
    %c0_i32_0 = arith.constant 0 : i32
    %c0_i32_1 = arith.constant 0 : i32
    return %c0_i32, %c0_i32_0 : i32, i32
  }
  func.func @transform_3(%arg0: i32, %arg1: i32) -> (i32, i32, i32) {
    %c0_i32 = arith.constant 0 : i32
    %c0_i32_0 = arith.constant 0 : i32
    %c0_i32_1 = arith.constant 0 : i32
    %c0_i32_2 = arith.constant 0 : i32
    return %c0_i32, %c0_i32_0, %c0_i32_1 : i32, i32, i32
  }
  func.func @transform_4(%arg0: i32, %arg1: i32) -> (i32, i32) {
    %c0_i32 = arith.constant 0 : i32
    %c0_i32_0 = arith.constant 0 : i32
    %c0_i32_1 = arith.constant 0 : i32
    return %c0_i32, %c0_i32_0 : i32, i32
  }
  func.func @transform_5(%arg0: i32, %arg1: i32) -> (i32, i32) {
    %c0_i32 = arith.constant 0 : i32
    %c0_i32_0 = arith.constant 0 : i32
    %c0_i32_1 = arith.constant 0 : i32
    return %c0_i32, %c0_i32_0 : i32, i32
  }
  func.func @transform_6(%arg0: i32, %arg1: i32) -> (i32, i32) {
    %c0_i32 = arith.constant 0 : i32
    %c0_i32_0 = arith.constant 0 : i32
    %c0_i32_1 = arith.constant 0 : i32
    return %c0_i32, %c0_i32_0 : i32, i32
  }
  func.func @transform_7(%arg0: i32, %arg1: i32) -> (i32, i32, i32, i32) {
    %c0_i32 = arith.constant 0 : i32
    %c0_i32_0 = arith.constant 0 : i32
    %c0_i32_1 = arith.constant 0 : i32
    return %arg0, %arg1, %c0_i32, %c0_i32_0 : i32, i32, i32, i32
  }
}

</mosaic_0001>

<llo_original>
// kernel: tpu_custom_call.1
$region0: #{tpu_custom_call.1}
  #allocation0 [shape = 'u32[]', space=smem, size = 0x4, offset = 0x4, fixed_abs, tag = 'smem constant byte address 0x4 - core index']
  #allocation1 [shape = 'u32[144,128]{1,0:T(1,128)}', space=vmem, size = 0x12000, scoped, tag = 'internal scratch']
  #allocation2 [shape = 'f32[256,4]{1,0:T(8,128)}', space=vmem, size = 0x20000, scoped, tag = 'scratch operand']
  #allocation3 [shape = 'f32[240,12]{1,0:T(8,128)}', space=vmem, size = 0x1e000, scoped, tag = 'scratch operand']
  %s0 = inlined_call_operand.vmem [shape: f32[2,2,240,16], index: 0, kind: input, shape index: {}]
  %s1 = inlined_call_operand.vmem [shape: f32[16,4], index: 1, kind: input, shape index: {}]
  %s2 = inlined_call_operand.vmem [shape: f32[1,4], index: 2, kind: input, shape index: {}]
  %s3 = inlined_call_operand.vmem [shape: f32[3,12,4], index: 3, kind: input, shape index: {}]
  %s4 = inlined_call_operand.vmem [shape: f32[1,4], index: 4, kind: input, shape index: {}]
  %s5 = inlined_call_operand.vmem [shape: f32[4,16], index: 5, kind: input, shape index: {}]
  %s6 = inlined_call_operand.vmem [shape: f32[1,16], index: 6, kind: input, shape index: {}]
  %s7 = inlined_call_operand.vmem [shape: f32[2,2,192,16], index: 7, kind: output, shape index: {}]
  %s8 = sld [smem:[#allocation0]]
  $region61: #{tpu_custom_call.1} parent=0
    _
  %s10 = ssub.s32 1, %s8
  %s11 = scalar_select 0, %s10, %s8
  loop: start=0, step=1, limit=6
  $region2: #{tpu_custom_call.1} parent=0 // loop_pre_header
    _
  $region3: #{tpu_custom_call.1} parent=0 // loop_header
    %s13 = sphi 0, %s17
    %p14 = scmp.ge.s32.totalorder %s13, 6
    %s20 = sphi 0, %s32
    %s21 = sphi 0, %s28
    %s22 = sphi 0, %s20
    %s23 = sphi 0, %s21
    %s24 = sphi 0, %s22
    %s25 = sphi 0, %s23
    %s37 = sphi 0, %s39
    %s40 = sphi 0, %s37
    %s41 = sphi 0, %s40
    %s57 = sphi 0, %s41
    %s61 = sphi 0, %s61
    %s63 = sphi 0, %s61
    %s64 = sphi 0, %s63
    %s78 = sphi 0, %s64
    %s82 = sphi 0, %s82
    %s84 = sphi 0, %s82
    %s85 = sphi 0, %s84
    %s99 = sphi 0, %s85
    %s103 = sphi 0, %s103
    %s105 = sphi 0, %s103
    %s106 = sphi 0, %s105
    %s120 = sphi 0, %s106
    %s124 = sphi 0, %s124
    %s126 = sphi 0, %s124
    %s127 = sphi 0, %s126
    %s141 = sphi 0, %s127
    %s145 = sphi 0, %s145
    %s147 = sphi 0, %s145
    %s148 = sphi 0, %s147
    %s162 = sphi 0, %s148
    %s166 = sphi 0, %s166
    %s168 = sphi 0, %s166
    %s169 = sphi 0, %s168
    %s183 = sphi 0, %s169
    %s191 = sphi 0, %s193
    %s194 = sphi 0, %s191
    %s195 = sphi 0, %s194
    %s211 = sphi 0, %s195
  $region4: #{tpu_custom_call.1} parent=0 // loop_header_branch
    %16 = sbr.rel (%p14) target = $region8
  $region5: #{tpu_custom_call.1} parent=0 // loop_body
    %s18 = ssub.s32 %s13, 1
    %s19 = ssub.s32 %s13, 2
    %s26 = sadd.s32 1, %s21
    %p27 = scmp.ge.s32.totalorder %s26, 2
    %s28 = scalar_select %p27, 0, %s26
    %s29 = sadd.s32 1, %s20
    %s30 = scalar_select %p27, %s29, %s20
    %p31 = scmp.ge.s32.totalorder %s30, 2
    %s32 = scalar_select %p31, 0, %s30
    %s33 = ssub.s32 %s20, %s32
    %s34 = ssub.s32 %s21, %s28
    %s35 = sor.u32 %s33, %s34
    %p36 = scmp.eq.s32.totalorder %s35, 0
    %s38 = sadd.s32 %s37, 1
    %s39 = scalar_select %p36, %s37, %s38
    %p42 = pneg %p36
    %p43 = scmp.eq.s32.totalorder %s13, 3
    %p44 = por %p42, %p43
    %p45 = scmp.ne.s32.totalorder %s37, %s40
    %p46 = scmp.eq.s32.totalorder %s13, 0
    %p47 = por %p45, %p46
    %p48 = scmp.ne.s32.totalorder %s37, %s40
    %p49 = scmp.eq.s32.totalorder %s18, 3
    %p50 = por %p48, %p49
    %p51 = scmp.ne.s32.totalorder %s40, %s41
    %p52 = scmp.eq.s32.totalorder %s18, 0
    %p53 = por %p51, %p52
    %p54 = scmp.ne.s32.totalorder %s40, %s41
    %p55 = scmp.eq.s32.totalorder %s19, 3
    %p56 = por %p54, %p55
    %p58 = scmp.ne.s32.totalorder %s41, %s57
    %p59 = scmp.eq.s32.totalorder %s19, 0
    %p60 = por %p58, %p59
    %s62 = sadd.s32 %s61, 1
    %p65 = scmp.eq.s32.totalorder %s13, 3
    %p66 = scmp.ne.s32.totalorder %s61, %s63
    %p67 = scmp.eq.s32.totalorder %s13, 0
    %p68 = por %p66, %p67
    %p69 = scmp.ne.s32.totalorder %s61, %s63
    %p70 = scmp.eq.s32.totalorder %s18, 3
    %p71 = por %p69, %p70
    %p72 = scmp.ne.s32.totalorder %s63, %s64
    %p73 = scmp.eq.s32.totalorder %s18, 0
    %p74 = por %p72, %p73
    %p75 = scmp.ne.s32.totalorder %s63, %s64
    %p76 = scmp.eq.s32.totalorder %s19, 3
    %p77 = por %p75, %p76
    %p79 = scmp.ne.s32.totalorder %s64, %s78
    %p80 = scmp.eq.s32.totalorder %s19, 0
    %p81 = por %p79, %p80
    %s83 = sadd.s32 %s82, 1
    %p86 = scmp.eq.s32.totalorder %s13, 3
    %p87 = scmp.ne.s32.totalorder %s82, %s84
    %p88 = scmp.eq.s32.totalorder %s13, 0
    %p89 = por %p87, %p88
    %p90 = scmp.ne.s32.totalorder %s82, %s84
    %p91 = scmp.eq.s32.totalorder %s18, 3
    %p92 = por %p90, %p91
    %p93 = scmp.ne.s32.totalorder %s84, %s85
    %p94 = scmp.eq.s32.totalorder %s18, 0
    %p95 = por %p93, %p94
    %p96 = scmp.ne.s32.totalorder %s84, %s85
    %p97 = scmp.eq.s32.totalorder %s19, 3
    %p98 = por %p96, %p97
    %p100 = scmp.ne.s32.totalorder %s85, %s99
    %p101 = scmp.eq.s32.totalorder %s19, 0
    %p102 = por %p100, %p101
    %s104 = sadd.s32 %s103, 1
    %p107 = scmp.eq.s32.totalorder %s13, 3
    %p108 = scmp.ne.s32.totalorder %s103, %s105
    %p109 = scmp.eq.s32.totalorder %s13, 0
    %p110 = por %p108, %p109
    %p111 = scmp.ne.s32.totalorder %s103, %s105
    %p112 = scmp.eq.s32.totalorder %s18, 3
    %p113 = por %p111, %p112
    %p114 = scmp.ne.s32.totalorder %s105, %s106
    %p115 = scmp.eq.s32.totalorder %s18, 0
    %p116 = por %p114, %p115
    %p117 = scmp.ne.s32.totalorder %s105, %s106
    %p118 = scmp.eq.s32.totalorder %s19, 3
    %p119 = por %p117, %p118
    %p121 = scmp.ne.s32.totalorder %s106, %s120
    %p122 = scmp.eq.s32.totalorder %s19, 0
    %p123 = por %p121, %p122
    %s125 = sadd.s32 %s124, 1
    %p128 = scmp.eq.s32.totalorder %s13, 3
    %p129 = scmp.ne.s32.totalorder %s124, %s126
    %p130 = scmp.eq.s32.totalorder %s13, 0
    %p131 = por %p129, %p130
    %p132 = scmp.ne.s32.totalorder %s124, %s126
    %p133 = scmp.eq.s32.totalorder %s18, 3
    %p134 = por %p132, %p133
    %p135 = scmp.ne.s32.totalorder %s126, %s127
    %p136 = scmp.eq.s32.totalorder %s18, 0
    %p137 = por %p135, %p136
    %p138 = scmp.ne.s32.totalorder %s126, %s127
    %p139 = scmp.eq.s32.totalorder %s19, 3
    %p140 = por %p138, %p139
    %p142 = scmp.ne.s32.totalorder %s127, %s141
    %p143 = scmp.eq.s32.totalorder %s19, 0
    %p144 = por %p142, %p143
    %s146 = sadd.s32 %s145, 1
    %p149 = scmp.eq.s32.totalorder %s13, 3
    %p150 = scmp.ne.s32.totalorder %s145, %s147
    %p151 = scmp.eq.s32.totalorder %s13, 0
    %p152 = por %p150, %p151
    %p153 = scmp.ne.s32.totalorder %s145, %s147
    %p154 = scmp.eq.s32.totalorder %s18, 3
    %p155 = por %p153, %p154
    %p156 = scmp.ne.s32.totalorder %s147, %s148
    %p157 = scmp.eq.s32.totalorder %s18, 0
    %p158 = por %p156, %p157
    %p159 = scmp.ne.s32.totalorder %s147, %s148
    %p160 = scmp.eq.s32.totalorder %s19, 3
    %p161 = por %p159, %p160
    %p163 = scmp.ne.s32.totalorder %s148, %s162
    %p164 = scmp.eq.s32.totalorder %s19, 0
    %p165 = por %p163, %p164
    %s167 = sadd.s32 %s166, 1
    %p170 = scmp.eq.s32.totalorder %s13, 3
    %p171 = scmp.ne.s32.totalorder %s166, %s168
    %p172 = scmp.eq.s32.totalorder %s13, 0
    %p173 = por %p171, %p172
    %p174 = scmp.ne.s32.totalorder %s166, %s168
    %p175 = scmp.eq.s32.totalorder %s18, 3
    %p176 = por %p174, %p175
    %p177 = scmp.ne.s32.totalorder %s168, %s169
    %p178 = scmp.eq.s32.totalorder %s18, 0
    %p179 = por %p177, %p178
    %p180 = scmp.ne.s32.totalorder %s168, %s169
    %p181 = scmp.eq.s32.totalorder %s19, 3
    %p182 = por %p180, %p181
    %p184 = scmp.ne.s32.totalorder %s169, %s183
    %p185 = scmp.eq.s32.totalorder %s19, 0
    %p186 = por %p184, %p185
    %s187 = ssub.s32 %s20, %s32
    %s188 = ssub.s32 %s21, %s28
    %s189 = sor.u32 %s187, %s188
    %p190 = scmp.eq.s32.totalorder %s189, 0
    %s192 = sadd.s32 %s191, 1
    %s193 = scalar_select %p190, %s191, %s192
    %p196 = pneg %p190
    %p197 = scmp.eq.s32.totalorder %s13, 3
    %p198 = por %p196, %p197
    %p199 = scmp.ne.s32.totalorder %s191, %s194
    %p200 = scmp.eq.s32.totalorder %s13, 0
    %p201 = por %p199, %p200
    %p202 = scmp.ne.s32.totalorder %s191, %s194
    %p203 = scmp.eq.s32.totalorder %s18, 3
    %p204 = por %p202, %p203
    %p205 = scmp.ne.s32.totalorder %s194, %s195
    %p206 = scmp.eq.s32.totalorder %s18, 0
    %p207 = por %p205, %p206
    %p208 = scmp.ne.s32.totalorder %s194, %s195
    %p209 = scmp.eq.s32.totalorder %s19, 3
    %p210 = por %p208, %p209
    %p212 = scmp.ne.s32.totalorder %s195, %s211
    %p213 = scmp.eq.s32.totalorder %s19, 0
    %p214 = por %p212, %p213
    %p215 = scmp.le.s32.totalorder 1, %s13
    %p216 = scmp.lt.s32.totalorder %s13, 5
    %p217 = pnand %p215, %p216
    %p218 = pneg %p217
    // Predicated region
    $region9: #{tpu_custom_call.1} parent=5 // pred_check
      _
    $region10: #{tpu_custom_call.1} parent=5 // pred_check_branch
      %220 = sbr.rel (%p217) target = $region12
    $region11: #{tpu_custom_call.1} parent=5 // pred_region
      %s221 = ssub.s32 %s13, 1
      // Predicated region
      $region13: #{tpu_custom_call.1} parent=11 // pred_check
        %p222 = pneg %p74
      $region14: #{tpu_custom_call.1} parent=11 // pred_check_branch
        %224 = sbr.rel (%p222) target = $region16
      $region15: #{tpu_custom_call.1} parent=11 // pred_region
        _
      $region16: #{tpu_custom_call.1} parent=11 // pred_fallthru
        _
      // Predicated region
      $region17: #{tpu_custom_call.1} parent=11 // pred_check
        %p225 = pneg %p95
      $region18: #{tpu_custom_call.1} parent=11 // pred_check_branch
        %227 = sbr.rel (%p225) target = $region20
      $region19: #{tpu_custom_call.1} parent=11 // pred_region
        _
      $region20: #{tpu_custom_call.1} parent=11 // pred_fallthru
        _
      // Predicated region
      $region21: #{tpu_custom_call.1} parent=11 // pred_check
        %p228 = pneg %p116
      $region22: #{tpu_custom_call.1} parent=11 // pred_check_branch
        %230 = sbr.rel (%p228) target = $region24
      $region23: #{tpu_custom_call.1} parent=11 // pred_region
        _
      $region24: #{tpu_custom_call.1} parent=11 // pred_fallthru
        _
      // Predicated region
      $region25: #{tpu_custom_call.1} parent=11 // pred_check
        %p231 = pneg %p137
      $region26: #{tpu_custom_call.1} parent=11 // pred_check_branch
        %233 = sbr.rel (%p231) target = $region28
      $region27: #{tpu_custom_call.1} parent=11 // pred_region
        _
      $region28: #{tpu_custom_call.1} parent=11 // pred_fallthru
        _
      // Predicated region
      $region29: #{tpu_custom_call.1} parent=11 // pred_check
        %p234 = pneg %p158
      $region30: #{tpu_custom_call.1} parent=11 // pred_check_branch
        %236 = sbr.rel (%p234) target = $region32
      $region31: #{tpu_custom_call.1} parent=11 // pred_region
        _
      $region32: #{tpu_custom_call.1} parent=11 // pred_fallthru
        _
      // Predicated region
      $region33: #{tpu_custom_call.1} parent=11 // pred_check
        %p237 = pneg %p179
      $region34: #{tpu_custom_call.1} parent=11 // pred_check_branch
        %239 = sbr.rel (%p237) target = $region36
      $region35: #{tpu_custom_call.1} parent=11 // pred_region
        _
      $region36: #{tpu_custom_call.1} parent=11 // pred_fallthru
        _
    $region12: #{tpu_custom_call.1} parent=5 // pred_fallthru
      _
    %p240 = scmp.lt.s32.totalorder %s13, 4
    // Predicated region
    $region37: #{tpu_custom_call.1} parent=5 // pred_check
      %p241 = pneg %p240
    $region38: #{tpu_custom_call.1} parent=5 // pred_check_branch
      %243 = sbr.rel (%p241) target = $region40
    $region39: #{tpu_custom_call.1} parent=5 // pred_region
      // Predicated region
      $region41: #{tpu_custom_call.1} parent=39 // pred_check
        %p244 = pneg %p47
      $region42: #{tpu_custom_call.1} parent=39 // pred_check_branch
        %246 = sbr.rel (%p244) target = $region44
      $region43: #{tpu_custom_call.1} parent=39 // pred_region
        %p247 = scmp.lt.s32.totalorder %s20, 1
        %s248 = scalar_select %p247, %s20, 1
        %p249 = scmp.lt.s32.totalorder %s21, 1
        %s250 = scalar_select %p249, %s21, 1
        %s251 = smul.addr %s250, 30
        %s252 = smul.addr %s248, 60
        %s253 = sadd.s32 %s251, %s252
        %s254 = smul.addr %s253, 8
        %s255 = scalar_lea.vmem %s0, %s254
      $region44: #{tpu_custom_call.1} parent=39 // pred_fallthru
        _
    $region40: #{tpu_custom_call.1} parent=5 // pred_fallthru
      _
    %p256 = scmp.le.s32.totalorder 1, %s13
    %p257 = scmp.lt.s32.totalorder %s13, 5
    %p258 = pnand %p256, %p257
    %p259 = pneg %p258
    // Predicated region
    $region45: #{tpu_custom_call.1} parent=5 // pred_check
      _
    $region46: #{tpu_custom_call.1} parent=5 // pred_check_branch
      %261 = sbr.rel (%p258) target = $region48
    $region47: #{tpu_custom_call.1} parent=5 // pred_region
      %s262 = ssub.s32 %s13, 1
      %p263 = scmp.lt.s32.totalorder %s22, 1
      %s264 = scalar_select %p263, %s22, 1
      %p265 = scmp.lt.s32.totalorder %s23, 1
      %s266 = scalar_select %p265, %s23, 1
      %s267 = smul.addr %s266, 30
      %s268 = smul.addr %s264, 60
      %s269 = sadd.s32 %s267, %s268
      %s270 = smul.addr %s269, 8
      %s271 = scalar_lea.vmem %s0, %s270
      %p272 = pneg %p53
      %p273 = pneg %p50
      %p274 = pneg %p74
      %p275 = pneg %p71
      %p276 = pneg %p95
      %p277 = pneg %p92
      %p278 = pneg %p116
      %p279 = pneg %p113
      %p280 = pneg %p137
      %p281 = pneg %p134
      %p282 = pneg %p158
      %p283 = pneg %p155
      %p284 = pneg %p179
      %p285 = pneg %p176
      %p286 = pneg %p207
      %p287 = pneg %p204
      %p288 = scmp.lt.s32.totalorder %s22, 1
      %s289 = scalar_select %p288, %s22, 1
      %p290 = scmp.lt.s32.totalorder %s23, 1
      %s291 = scalar_select %p290, %s23, 1
      %s292 = smul.addr %s291, 24
      %s293 = smul.addr %s289, 48
      %s294 = sadd.s32 %s292, %s293
      %s295 = smul.addr %s294, 8
      %s296 = scalar_lea.vmem %s7, %s295
      %p297 = scmp.lt.s32.totalorder %s22, 1
      %s298 = scalar_select %p297, %s22, 1
      %p299 = scmp.lt.s32.totalorder %s23, 1
      %s300 = scalar_select %p299, %s23, 1
      %s301 = smul.addr %s300, 30
      %s302 = smul.addr %s298, 60
      %s303 = sadd.s32 %s301, %s302
      %s304 = smul.addr %s303, 8
      %s305 = scalar_lea.vmem %s0, %s304
      %p306 = scmp.lt.s32.totalorder %s22, 1
      %s307 = scalar_select %p306, %s22, 1
      %p308 = scmp.lt.s32.totalorder %s23, 1
      %s309 = scalar_select %p308, %s23, 1
      %s310 = smul.addr %s309, 24
      %s311 = smul.addr %s307, 48
      %s312 = sadd.s32 %s310, %s311
      %s313 = smul.addr %s312, 8
      %s314 = scalar_lea.vmem %s7, %s313
      %v315 = vld [vmem:[%s305] sm:$0xff]
      %v316 = vld [vmem:[%s305 + $0x8] sm:$0xff]
      %v317 = vld [vmem:[%s305 + $0x10] sm:$0xff]
      %v318 = vld [vmem:[%s305 + $0x18] sm:$0xff]
      %v319 = vld [vmem:[%s305 + $0x20] sm:$0xff]
      %v320 = vld [vmem:[%s305 + $0x28] sm:$0xff]
      %v321 = vld [vmem:[%s305 + $0x30] sm:$0xff]
      %v322 = vld [vmem:[%s305 + $0x38] sm:$0xff]
      %v323 = vld [vmem:[%s305 + $0x40] sm:$0xff]
      %v324 = vld [vmem:[%s305 + $0x48] sm:$0xff]
      %v325 = vld [vmem:[%s305 + $0x50] sm:$0xff]
      %v326 = vld [vmem:[%s305 + $0x58] sm:$0xff]
      %v327 = vld [vmem:[%s305 + $0x60] sm:$0xff]
      %v328 = vld [vmem:[%s305 + $0x68] sm:$0xff]
      %v329 = vld [vmem:[%s305 + $0x70] sm:$0xff]
      %v330 = vld [vmem:[%s305 + $0x78] sm:$0xff]
      %v331 = vld [vmem:[%s305 + $0x80] sm:$0xff]
      %v332 = vld [vmem:[%s305 + $0x88] sm:$0xff]
      %v333 = vld [vmem:[%s305 + $0x90] sm:$0xff]
      %v334 = vld [vmem:[%s305 + $0x98] sm:$0xff]
      %v335 = vld [vmem:[%s305 + $0xa0] sm:$0xff]
      %v336 = vld [vmem:[%s305 + $0xa8] sm:$0xff]
      %v337 = vld [vmem:[%s305 + $0xb0] sm:$0xff]
      %v338 = vld [vmem:[%s305 + $0xb8] sm:$0xff]
      %v339 = vld [vmem:[%s305 + $0xc0] sm:$0xff]
      %v340 = vld [vmem:[%s305 + $0xc8] sm:$0xff]
      %v341 = vld [vmem:[%s305 + $0xd0] sm:$0xff]
      %v342 = vld [vmem:[%s305 + $0xd8] sm:$0xff]
      %v343 = vld [vmem:[%s305 + $0xe0] sm:$0xff]
      %v344 = vld [vmem:[%s305 + $0xe8] sm:$0xff]
      %v345 = vld [vmem:[%s1] sm:$0xff]
      %v346 = vld [vmem:[%s1 + $0x8] sm:$0xff]
      %v347 = vld [vmem:[%s2] sm:$0x1]
      %v349 = vlaneseq
      %v350 = vshrl.u32 %v349, 7
      %v351 = vsub.s32 0, %v350
      %v352 = vrot.slane %v347, %v351
      %vm354 = vcmask 130048
      %v356 = vsel %vm354, %v315, 0
      %v359 = vsel %vm354, %v316, 0
      %v362 = vsel %vm354, %v317, 0
      %v365 = vsel %vm354, %v318, 0
      %v368 = vsel %vm354, %v319, 0
      %v371 = vsel %vm354, %v320, 0
      %v374 = vsel %vm354, %v321, 0
      %v377 = vsel %vm354, %v322, 0
      %v380 = vsel %vm354, %v323, 0
      %v383 = vsel %vm354, %v324, 0
      %v386 = vsel %vm354, %v325, 0
      %v389 = vsel %vm354, %v326, 0
      %v392 = vsel %vm354, %v327, 0
      %v395 = vsel %vm354, %v328, 0
      %v398 = vsel %vm354, %v329, 0
      %v401 = vsel %vm354, %v330, 0
      %v404 = vsel %vm354, %v331, 0
      %v407 = vsel %vm354, %v332, 0
      %v410 = vsel %vm354, %v333, 0
      %v413 = vsel %vm354, %v334, 0
      %v416 = vsel %vm354, %v335, 0
      %v419 = vsel %vm354, %v336, 0
      %v422 = vsel %vm354, %v337, 0
      %v425 = vsel %vm354, %v338, 0
      %v428 = vsel %vm354, %v339, 0
      %v431 = vsel %vm354, %v340, 0
      %v434 = vsel %vm354, %v341, 0
      %v437 = vsel %vm354, %v342, 0
      %v440 = vsel %vm354, %v343, 0
      %v443 = vsel %vm354, %v344, 0
      %445 = vmatprep.subr.mxu0 0.0
      %446 = vmatpush1.msra.mxu0 0.0
      %447 = vmatprep.subr.mxu0 0.0
      %448 = vmatpush1.msra.mxu0 0.0
      %449 = vmatprep.subr.mxu0 0.0
      %450 = vmatpush1.msra.mxu0 0.0
      %451 = vmatprep.subr.mxu0 0.0
      %452 = vmatpush1.msra.mxu0 0.0
      %453 = vmatprep.subr.mxu0 0.0
      %454 = vmatpush1.msra.mxu0 0.0
      %455 = vmatprep.subr.mxu0 0.0
      %456 = vmatpush1.msra.mxu0 0.0
      %457 = vmatprep.subr.mxu0 0.0
      %458 = vmatpush1.msra.mxu0 0.0
      %459 = vmatprep.subr.mxu0 0.0
      %460 = vmatpush1.msra.mxu0 0.0
      %461 = vmatprep.subr.mxu0 0.0
      %462 = vmatpush1.msra.mxu0 0.0
      %463 = vmatprep.subr.mxu0 0.0
      %464 = vmatpush1.msra.mxu0 0.0
      %465 = vmatprep.subr.mxu0 0.0
      %466 = vmatpush1.msra.mxu0 0.0
      %467 = vmatprep.subr.mxu0 0.0
      %468 = vmatpush1.msra.mxu0 0.0
      %469 = vmatprep.subr.mxu0 0.0
      %470 = vmatpush1.msra.mxu0 0.0
      %471 = vmatprep.subr.mxu0 0.0
      %472 = vmatpush1.msra.mxu0 0.0
      %473 = vmatprep.subr.mxu0 0.0
      %474 = vmatpush1.msra.mxu0 %v346
      %475 = vmatprep.subr.mxu0 0.0
      %476 = vmatpush1.msra.mxu0 %v345
      %477 = vmatprep.subr.mxu0 0.0
      %478 = vmatpush2.msra.mxu0 0.0
      %479 = vmatprep.subr.mxu0 0.0
      %480 = vmatpush2.msra.mxu0 0.0
      %481 = vmatprep.subr.mxu0 0.0
      %482 = vmatpush2.msra.mxu0 0.0
      %483 = vmatprep.subr.mxu0 0.0
      %484 = vmatpush2.msra.mxu0 0.0
      %485 = vmatprep.subr.mxu0 0.0
      %486 = vmatpush2.msra.mxu0 0.0
      %487 = vmatprep.subr.mxu0 0.0
      %488 = vmatpush2.msra.mxu0 0.0
      %489 = vmatprep.subr.mxu0 0.0
      %490 = vmatpush2.msra.mxu0 0.0
      %491 = vmatprep.subr.mxu0 0.0
      %492 = vmatpush2.msra.mxu0 0.0
      %493 = vmatprep.subr.mxu0 0.0
      %494 = vmatpush2.msra.mxu0 0.0
      %495 = vmatprep.subr.mxu0 0.0
      %496 = vmatpush2.msra.mxu0 0.0
      %497 = vmatprep.subr.mxu0 0.0
      %498 = vmatpush2.msra.mxu0 0.0
      %499 = vmatprep.subr.mxu0 0.0
      %500 = vmatpush2.msra.mxu0 0.0
      %501 = vmatprep.subr.mxu0 0.0
      %502 = vmatpush2.msra.mxu0 0.0
      %503 = vmatprep.subr.mxu0 0.0
      %504 = vmatpush2.msra.mxu0 0.0
      %505 = vmatprep.subr.mxu0 0.0
      %506 = vmatpush2.msra.mxu0 0.0
      %507 = vmatprep.subr.mxu0 0.0
      %508 = vmatpush2.msra.mxu0 0.0
      %509 = vmatprep.mubr.f32.mxu0 0.0
      %510 = vmatmul.mubr.f32.gmra.mxu0 %v356
      %v511 = vpop.f32.mrf.mxu0
      %v512 = vadd.f32 %v352, %v511
      %v513 = vpop.f32.mrf.mxu0
      %514 = vmatprep.mubr.f32.mxu0 0.0
      %515 = vmatmul.mubr.f32.gmra.mxu0 %v359
      %v516 = vpop.f32.mrf.mxu0
      %v517 = vadd.f32 %v352, %v516
      %v518 = vpop.f32.mrf.mxu0
      %519 = vmatprep.mubr.f32.mxu0 0.0
      %520 = vmatmul.mubr.f32.gmra.mxu0 %v362
      %v521 = vpop.f32.mrf.mxu0
      %v522 = vadd.f32 %v352, %v521
      %v523 = vpop.f32.mrf.mxu0
      %524 = vmatprep.mubr.f32.mxu0 0.0
      %525 = vmatmul.mubr.f32.gmra.mxu0 %v365
      %v526 = vpop.f32.mrf.mxu0
      %v527 = vadd.f32 %v352, %v526
      %v528 = vpop.f32.mrf.mxu0
      %529 = vmatprep.mubr.f32.mxu0 0.0
      %530 = vmatmul.mubr.f32.gmra.mxu0 %v368
      %v531 = vpop.f32.mrf.mxu0
      %v532 = vadd.f32 %v352, %v531
      %v533 = vpop.f32.mrf.mxu0
      %534 = vmatprep.mubr.f32.mxu0 0.0
      %535 = vmatmul.mubr.f32.gmra.mxu0 %v371
      %v536 = vpop.f32.mrf.mxu0
      %v537 = vadd.f32 %v352, %v536
      %v538 = vpop.f32.mrf.mxu0
      %539 = vmatprep.mubr.f32.mxu0 0.0
      %540 = vmatmul.mubr.f32.gmra.mxu0 %v374
      %v541 = vpop.f32.mrf.mxu0
      %v542 = vadd.f32 %v352, %v541
      %v543 = vpop.f32.mrf.mxu0
      %544 = vmatprep.mubr.f32.mxu0 0.0
      %545 = vmatmul.mubr.f32.gmra.mxu0 %v377
      %v546 = vpop.f32.mrf.mxu0
      %v547 = vadd.f32 %v352, %v546
      %v548 = vpop.f32.mrf.mxu0
      %549 = vmatprep.mubr.f32.mxu0 0.0
      %550 = vmatmul.mubr.f32.gmra.mxu0 %v380
      %v551 = vpop.f32.mrf.mxu0
      %v552 = vadd.f32 %v352, %v551
      %v553 = vpop.f32.mrf.mxu0
      %554 = vmatprep.mubr.f32.mxu0 0.0
      %555 = vmatmul.mubr.f32.gmra.mxu0 %v383
      %v556 = vpop.f32.mrf.mxu0
      %v557 = vadd.f32 %v352, %v556
      %v558 = vpop.f32.mrf.mxu0
      %559 = vmatprep.mubr.f32.mxu0 0.0
      %560 = vmatmul.mubr.f32.gmra.mxu0 %v386
      %v561 = vpop.f32.mrf.mxu0
      %v562 = vadd.f32 %v352, %v561
      %v563 = vpop.f32.mrf.mxu0
      %564 = vmatprep.mubr.f32.mxu0 0.0
      %565 = vmatmul.mubr.f32.gmra.mxu0 %v389
      %v566 = vpop.f32.mrf.mxu0
      %v567 = vadd.f32 %v352, %v566
      %v568 = vpop.f32.mrf.mxu0
      %569 = vmatprep.mubr.f32.mxu0 0.0
      %570 = vmatmul.mubr.f32.gmra.mxu0 %v392
      %v571 = vpop.f32.mrf.mxu0
      %v572 = vadd.f32 %v352, %v571
      %v573 = vpop.f32.mrf.mxu0
      %574 = vmatprep.mubr.f32.mxu0 0.0
      %575 = vmatmul.mubr.f32.gmra.mxu0 %v395
      %v576 = vpop.f32.mrf.mxu0
      %v577 = vadd.f32 %v352, %v576
      %v578 = vpop.f32.mrf.mxu0
      %579 = vmatprep.mubr.f32.mxu0 0.0
      %580 = vmatmul.mubr.f32.gmra.mxu0 %v398
      %v581 = vpop.f32.mrf.mxu0
      %v582 = vadd.f32 %v352, %v581
      %v583 = vpop.f32.mrf.mxu0
      %584 = vmatprep.mubr.f32.mxu0 0.0
      %585 = vmatmul.mubr.f32.gmra.mxu0 %v401
      %v586 = vpop.f32.mrf.mxu0
      %v587 = vadd.f32 %v352, %v586
      %v588 = vpop.f32.mrf.mxu0
      %589 = vmatprep.mubr.f32.mxu0 0.0
      %590 = vmatmul.mubr.f32.gmra.mxu0 %v404
      %v591 = vpop.f32.mrf.mxu0
      %v592 = vadd.f32 %v352, %v591
      %v593 = vpop.f32.mrf.mxu0
      %594 = vmatprep.mubr.f32.mxu0 0.0
      %595 = vmatmul.mubr.f32.gmra.mxu0 %v407
      %v596 = vpop.f32.mrf.mxu0
      %v597 = vadd.f32 %v352, %v596
      %v598 = vpop.f32.mrf.mxu0
      %599 = vmatprep.mubr.f32.mxu0 0.0
      %600 = vmatmul.mubr.f32.gmra.mxu0 %v410
      %v601 = vpop.f32.mrf.mxu0
      %v602 = vadd.f32 %v352, %v601
      %v603 = vpop.f32.mrf.mxu0
      %604 = vmatprep.mubr.f32.mxu0 0.0
      %605 = vmatmul.mubr.f32.gmra.mxu0 %v413
      %v606 = vpop.f32.mrf.mxu0
      %v607 = vadd.f32 %v352, %v606
      %v608 = vpop.f32.mrf.mxu0
      %609 = vmatprep.mubr.f32.mxu0 0.0
      %610 = vmatmul.mubr.f32.gmra.mxu0 %v416
      %v611 = vpop.f32.mrf.mxu0
      %v612 = vadd.f32 %v352, %v611
      %v613 = vpop.f32.mrf.mxu0
      %614 = vmatprep.mubr.f32.mxu0 0.0
      %615 = vmatmul.mubr.f32.gmra.mxu0 %v419
      %v616 = vpop.f32.mrf.mxu0
      %v617 = vadd.f32 %v352, %v616
      %v618 = vpop.f32.mrf.mxu0
      %619 = vmatprep.mubr.f32.mxu0 0.0
      %620 = vmatmul.mubr.f32.gmra.mxu0 %v422
      %v621 = vpop.f32.mrf.mxu0
      %v622 = vadd.f32 %v352, %v621
      %v623 = vpop.f32.mrf.mxu0
      %624 = vmatprep.mubr.f32.mxu0 0.0
      %625 = vmatmul.mubr.f32.gmra.mxu0 %v425
      %v626 = vpop.f32.mrf.mxu0
      %v627 = vadd.f32 %v352, %v626
      %v628 = vpop.f32.mrf.mxu0
      %629 = vmatprep.mubr.f32.mxu0 0.0
      %630 = vmatmul.mubr.f32.gmra.mxu0 %v428
      %v631 = vpop.f32.mrf.mxu0
      %v632 = vadd.f32 %v352, %v631
      %v633 = vpop.f32.mrf.mxu0
      %634 = vmatprep.mubr.f32.mxu0 0.0
      %635 = vmatmul.mubr.f32.gmra.mxu0 %v431
      %v636 = vpop.f32.mrf.mxu0
      %v637 = vadd.f32 %v352, %v636
      %v638 = vpop.f32.mrf.mxu0
      %639 = vmatprep.mubr.f32.mxu0 0.0
      %640 = vmatmul.mubr.f32.gmra.mxu0 %v434
      %v641 = vpop.f32.mrf.mxu0
      %v642 = vadd.f32 %v352, %v641
      %v643 = vpop.f32.mrf.mxu0
      %644 = vmatprep.mubr.f32.mxu0 0.0
      %645 = vmatmul.mubr.f32.gmra.mxu0 %v437
      %v646 = vpop.f32.mrf.mxu0
      %v647 = vadd.f32 %v352, %v646
      %v648 = vpop.f32.mrf.mxu0
      %649 = vmatprep.mubr.f32.mxu0 0.0
      %650 = vmatmul.mubr.f32.gmra.mxu0 %v440
      %v651 = vpop.f32.mrf.mxu0
      %v652 = vadd.f32 %v352, %v651
      %v653 = vpop.f32.mrf.mxu0
      %654 = vmatprep.mubr.f32.mxu0 0.0
      %655 = vmatmul.mubr.f32.gmra.mxu0 %v443
      %v656 = vpop.f32.mrf.mxu0
      %v657 = vadd.f32 %v352, %v656
      %v658 = vpop.f32.mrf.mxu0
      %659 = vdwg.mxu0
      %v660 = vmax.f32 %v512, 0.0
      %v661 = vmax.f32 %v517, 0.0
      %v662 = vmax.f32 %v522, 0.0
      %v663 = vmax.f32 %v527, 0.0
      %v664 = vmax.f32 %v532, 0.0
      %v665 = vmax.f32 %v537, 0.0
      %v666 = vmax.f32 %v542, 0.0
      %v667 = vmax.f32 %v547, 0.0
      %v668 = vmax.f32 %v552, 0.0
      %v669 = vmax.f32 %v557, 0.0
      %v670 = vmax.f32 %v562, 0.0
      %v671 = vmax.f32 %v567, 0.0
      %v672 = vmax.f32 %v572, 0.0
      %v673 = vmax.f32 %v577, 0.0
      %v674 = vmax.f32 %v582, 0.0
      %v675 = vmax.f32 %v587, 0.0
      %v676 = vmax.f32 %v592, 0.0
      %v677 = vmax.f32 %v597, 0.0
      %v678 = vmax.f32 %v602, 0.0
      %v679 = vmax.f32 %v607, 0.0
      %v680 = vmax.f32 %v612, 0.0
      %v681 = vmax.f32 %v617, 0.0
      %v682 = vmax.f32 %v622, 0.0
      %v683 = vmax.f32 %v627, 0.0
      %v684 = vmax.f32 %v632, 0.0
      %v685 = vmax.f32 %v637, 0.0
      %v686 = vmax.f32 %v642, 0.0
      %v687 = vmax.f32 %v647, 0.0
      %v688 = vmax.f32 %v652, 0.0
      %v689 = vmax.f32 %v657, 0.0
      %v690 = vlaneseq
      %v691 = vshrl.u32 %v690, 7
      %v692 = vadd.s32 %v691, 8
      %v693 = vadd.s32 %v691, 16
      %vm694 = vcmp.ge.s32.totalorder %v691, 1
      %vm695 = vcmp.ge.s32.totalorder %v692, 1
      %vm696 = vcmp.ge.s32.totalorder %v693, 1
      %vm697 = vcmp.le.s32.totalorder %v691, 16
      %vm698 = vcmp.le.s32.totalorder %v692, 16
      %vm699 = vcmp.le.s32.totalorder %v693, 16
      %vm700 = vmand %vm694, %vm697
      %vm701 = vmand %vm695, %vm698
      %vm702 = vmand %vm696, %vm699
      %v703 = vsel %vm700, 1, 0
      %v704 = vsel %vm701, 1, 0
      %v705 = vsel %vm702, 1, 0
      %v706 = vcvt.s32.f32 %v703
      %v707 = vcvt.s32.f32 %v704
      %v708 = vcvt.s32.f32 %v705
      %v709 = vadd.s32 %v691, 24
      %v710 = vadd.s32 %v691, 32
      %v711 = vadd.s32 %v691, 40
      %v712 = vadd.s32 %v691, 48
      %v713 = vadd.s32 %v691, 56
      %v714 = vadd.s32 %v691, 64
      %v715 = vadd.s32 %v691, 72
      %v716 = vadd.s32 %v691, 80
      %v717 = vadd.s32 %v691, 88
      %v718 = vadd.s32 %v691, 96
      %v719 = vadd.s32 %v691, 104
      %v720 = vadd.s32 %v691, 112
      %v721 = vadd.s32 %v691, 120
      %v722 = vadd.s32 %v691, 128
      %v723 = vadd.s32 %v691, 136
      %v724 = vadd.s32 %v691, 144
      %v725 = vadd.s32 %v691, 152
      %v726 = vadd.s32 %v691, 160
      %v727 = vadd.s32 %v691, 168
      %v728 = vadd.s32 %v691, 176
      %v729 = vadd.s32 %v691, 184
      %v730 = vadd.s32 %v691, 192
      %v731 = vadd.s32 %v691, 200
      %v732 = vadd.s32 %v691, 208
      %v733 = vadd.s32 %v691, 216
      %v734 = vadd.s32 %v691, 224
      %v735 = vadd.s32 %v691, 232
      %p736 = scmp.eq.s32.totalorder %s23, 0
      %vm737 = vcmp.lt.s32.totalorder %v691, 24
      %vm738 = vcmp.lt.s32.totalorder %v692, 24
      %vm739 = vcmp.lt.s32.totalorder %v693, 24
      %vm740 = vcmp.lt.s32.totalorder %v709, 24
      %vm741 = vcmp.lt.s32.totalorder %v710, 24
      %vm742 = vcmp.lt.s32.totalorder %v711, 24
      %vm743 = vcmp.lt.s32.totalorder %v712, 24
      %vm744 = vcmp.lt.s32.totalorder %v713, 24
      %vm745 = vcmp.lt.s32.totalorder %v714, 24
      %vm746 = vcmp.lt.s32.totalorder %v715, 24
      %vm747 = vcmp.lt.s32.totalorder %v716, 24
      %vm748 = vcmp.lt.s32.totalorder %v717, 24
      %vm749 = vcmp.lt.s32.totalorder %v718, 24
      %vm750 = vcmp.lt.s32.totalorder %v719, 24
      %vm751 = vcmp.lt.s32.totalorder %v720, 24
      %vm752 = vcmp.lt.s32.totalorder %v721, 24
      %vm753 = vcmp.lt.s32.totalorder %v722, 24
      %vm754 = vcmp.lt.s32.totalorder %v723, 24
      %vm755 = vcmp.lt.s32.totalorder %v724, 24
      %vm756 = vcmp.lt.s32.totalorder %v725, 24
      %vm757 = vcmp.lt.s32.totalorder %v726, 24
      %vm758 = vcmp.lt.s32.totalorder %v727, 24
      %vm759 = vcmp.lt.s32.totalorder %v728, 24
      %vm760 = vcmp.lt.s32.totalorder %v729, 24
      %vm761 = vcmp.lt.s32.totalorder %v730, 24
      %vm762 = vcmp.lt.s32.totalorder %v731, 24
      %vm763 = vcmp.lt.s32.totalorder %v732, 24
      %vm764 = vcmp.lt.s32.totalorder %v733, 24
      %vm765 = vcmp.lt.s32.totalorder %v734, 24
      %vm766 = vcmp.lt.s32.totalorder %v735, 24
      %s767 = scalar_select %p736, 1, 0
      %v768 = vstv %s767
      %vm769 = vcmp.eq.s32.totalorder %v768, 1
      %vm770 = vmand %vm769, %vm737
      %vm771 = vmand %vm769, %vm738
      %vm772 = vmand %vm769, %vm739
      %vm773 = vmand %vm769, %vm740
      %vm774 = vmand %vm769, %vm741
      %vm775 = vmand %vm769, %vm742
      %vm776 = vmand %vm769, %vm743
      %vm777 = vmand %vm769, %vm744
      %vm778 = vmand %vm769, %vm745
      %vm779 = vmand %vm769, %vm746
      %vm780 = vmand %vm769, %vm747
      %vm781 = vmand %vm769, %vm748
      %vm782 = vmand %vm769, %vm749
      %vm783 = vmand %vm769, %vm750
      %vm784 = vmand %vm769, %vm751
      %vm785 = vmand %vm769, %vm752
      %vm786 = vmand %vm769, %vm753
      %vm787 = vmand %vm769, %vm754
      %vm788 = vmand %vm769, %vm755
      %vm789 = vmand %vm769, %vm756
      %vm790 = vmand %vm769, %vm757
      %vm791 = vmand %vm769, %vm758
      %vm792 = vmand %vm769, %vm759
      %vm793 = vmand %vm769, %vm760
      %vm794 = vmand %vm769, %vm761
      %vm795 = vmand %vm769, %vm762
      %vm796 = vmand %vm769, %vm763
      %vm797 = vmand %vm769, %vm764
      %vm798 = vmand %vm769, %vm765
      %vm799 = vmand %vm769, %vm766
      %v800 = vsel %vm770, 0.0, %v706
      %v801 = vsel %vm771, 0.0, %v707
      %v802 = vsel %vm772, 0.0, %v708
      %v803 = vsel %vm773, 0.0, %v706
      %v804 = vsel %vm774, 0.0, %v707
      %v805 = vsel %vm775, 0.0, %v708
      %v806 = vsel %vm776, 0.0, %v706
      %v807 = vsel %vm777, 0.0, %v707
      %v808 = vsel %vm778, 0.0, %v708
      %v809 = vsel %vm779, 0.0, %v706
      %v810 = vsel %vm780, 0.0, %v707
      %v811 = vsel %vm781, 0.0, %v708
      %v812 = vsel %vm782, 0.0, %v706
      %v813 = vsel %vm783, 0.0, %v707
      %v814 = vsel %vm784, 0.0, %v708
      %v815 = vsel %vm785, 0.0, %v706
      %v816 = vsel %vm786, 0.0, %v707
      %v817 = vsel %vm787, 0.0, %v708
      %v818 = vsel %vm788, 0.0, %v706
      %v819 = vsel %vm789, 0.0, %v707
      %v820 = vsel %vm790, 0.0, %v708
      %v821 = vsel %vm791, 0.0, %v706
      %v822 = vsel %vm792, 0.0, %v707
      %v823 = vsel %vm793, 0.0, %v708
      %v824 = vsel %vm794, 0.0, %v706
      %v825 = vsel %vm795, 0.0, %v707
      %v826 = vsel %vm796, 0.0, %v708
      %v827 = vsel %vm797, 0.0, %v706
      %v828 = vsel %vm798, 0.0, %v707
      %v829 = vsel %vm799, 0.0, %v708
      %p830 = scmp.eq.s32.totalorder %s23, 1
      %vm831 = vcmp.ge.s32.totalorder %v691, 216
      %vm832 = vcmp.ge.s32.totalorder %v692, 216
      %vm833 = vcmp.ge.s32.totalorder %v693, 216
      %vm834 = vcmp.ge.s32.totalorder %v709, 216
      %vm835 = vcmp.ge.s32.totalorder %v710, 216
      %vm836 = vcmp.ge.s32.totalorder %v711, 216
      %vm837 = vcmp.ge.s32.totalorder %v712, 216
      %vm838 = vcmp.ge.s32.totalorder %v713, 216
      %vm839 = vcmp.ge.s32.totalorder %v714, 216
      %vm840 = vcmp.ge.s32.totalorder %v715, 216
      %vm841 = vcmp.ge.s32.totalorder %v716, 216
      %vm842 = vcmp.ge.s32.totalorder %v717, 216
      %vm843 = vcmp.ge.s32.totalorder %v718, 216
      %vm844 = vcmp.ge.s32.totalorder %v719, 216
      %vm845 = vcmp.ge.s32.totalorder %v720, 216
      %vm846 = vcmp.ge.s32.totalorder %v721, 216
      %vm847 = vcmp.ge.s32.totalorder %v722, 216
      %vm848 = vcmp.ge.s32.totalorder %v723, 216
      %vm849 = vcmp.ge.s32.totalorder %v724, 216
      %vm850 = vcmp.ge.s32.totalorder %v725, 216
      %vm851 = vcmp.ge.s32.totalorder %v726, 216
      %vm852 = vcmp.ge.s32.totalorder %v727, 216
      %vm853 = vcmp.ge.s32.totalorder %v728, 216
      %vm854 = vcmp.ge.s32.totalorder %v729, 216
      %vm855 = vcmp.ge.s32.totalorder %v730, 216
      %vm856 = vcmp.ge.s32.totalorder %v731, 216
      %vm857 = vcmp.ge.s32.totalorder %v732, 216
      %vm858 = vcmp.ge.s32.totalorder %v733, 216
      %vm859 = vcmp.ge.s32.totalorder %v734, 216
      %vm860 = vcmp.ge.s32.totalorder %v735, 216
      %s861 = scalar_select %p830, 1, 0
      %v862 = vstv %s861
      %vm863 = vcmp.eq.s32.totalorder %v862, 1
      %vm864 = vmand %vm863, %vm831
      %vm865 = vmand %vm863, %vm832
      %vm866 = vmand %vm863, %vm833
      %vm867 = vmand %vm863, %vm834
      %vm868 = vmand %vm863, %vm835
      %vm869 = vmand %vm863, %vm836
      %vm870 = vmand %vm863, %vm837
      %vm871 = vmand %vm863, %vm838
      %vm872 = vmand %vm863, %vm839
      %vm873 = vmand %vm863, %vm840
      %vm874 = vmand %vm863, %vm841
      %vm875 = vmand %vm863, %vm842
      %vm876 = vmand %vm863, %vm843
      %vm877 = vmand %vm863, %vm844
      %vm878 = vmand %vm863, %vm845
      %vm879 = vmand %vm863, %vm846
      %vm880 = vmand %vm863, %vm847
      %vm881 = vmand %vm863, %vm848
      %vm882 = vmand %vm863, %vm849
      %vm883 = vmand %vm863, %vm850
      %vm884 = vmand %vm863, %vm851
      %vm885 = vmand %vm863, %vm852
      %vm886 = vmand %vm863, %vm853
      %vm887 = vmand %vm863, %vm854
      %vm888 = vmand %vm863, %vm855
      %vm889 = vmand %vm863, %vm856
      %vm890 = vmand %vm863, %vm857
      %vm891 = vmand %vm863, %vm858
      %vm892 = vmand %vm863, %vm859
      %vm893 = vmand %vm863, %vm860
      %v894 = vsel %vm864, 0.0, %v800
      %v895 = vsel %vm865, 0.0, %v801
      %v896 = vsel %vm866, 0.0, %v802
      %v897 = vsel %vm867, 0.0, %v803
      %v898 = vsel %vm868, 0.0, %v804
      %v899 = vsel %vm869, 0.0, %v805
      %v900 = vsel %vm870, 0.0, %v806
      %v901 = vsel %vm871, 0.0, %v807
      %v902 = vsel %vm872, 0.0, %v808
      %v903 = vsel %vm873, 0.0, %v809
      %v904 = vsel %vm874, 0.0, %v810
      %v905 = vsel %vm875, 0.0, %v811
      %v906 = vsel %vm876, 0.0, %v812
      %v907 = vsel %vm877, 0.0, %v813
      %v908 = vsel %vm878, 0.0, %v814
      %v909 = vsel %vm879, 0.0, %v815
      %v910 = vsel %vm880, 0.0, %v816
      %v911 = vsel %vm881, 0.0, %v817
      %v912 = vsel %vm882, 0.0, %v818
      %v913 = vsel %vm883, 0.0, %v819
      %v914 = vsel %vm884, 0.0, %v820
      %v915 = vsel %vm885, 0.0, %v821
      %v916 = vsel %vm886, 0.0, %v822
      %v917 = vsel %vm887, 0.0, %v823
      %v918 = vsel %vm888, 0.0, %v824
      %v919 = vsel %vm889, 0.0, %v825
      %v920 = vsel %vm890, 0.0, %v826
      %v921 = vsel %vm891, 0.0, %v827
      %v922 = vsel %vm892, 0.0, %v828
      %v923 = vsel %vm893, 0.0, %v829
      %925 = vset.pattern.permute.xlu0 0
      %926 = vperm.xlu0 %925, %v894
      %v927 = vpop.permute.xlu0 %926
      %930 = vset.pattern.permute.xlu0 0
      %931 = vperm.xlu0 %930, %v895
      %v932 = vpop.permute.xlu0 %931
      %935 = vset.pattern.permute.xlu0 0
      %936 = vperm.xlu0 %935, %v896
      %v937 = vpop.permute.xlu0 %936
      %940 = vset.pattern.permute.xlu0 0
      %941 = vperm.xlu0 %940, %v897
      %v942 = vpop.permute.xlu0 %941
      %945 = vset.pattern.permute.xlu0 0
      %946 = vperm.xlu0 %945, %v898
      %v947 = vpop.permute.xlu0 %946
      %950 = vset.pattern.permute.xlu0 0
      %951 = vperm.xlu0 %950, %v899
      %v952 = vpop.permute.xlu0 %951
      %955 = vset.pattern.permute.xlu0 0
      %956 = vperm.xlu0 %955, %v900
      %v957 = vpop.permute.xlu0 %956
      %960 = vset.pattern.permute.xlu0 0
      %961 = vperm.xlu0 %960, %v901
      %v962 = vpop.permute.xlu0 %961
      %965 = vset.pattern.permute.xlu0 0
      %966 = vperm.xlu0 %965, %v902
      %v967 = vpop.permute.xlu0 %966
      %970 = vset.pattern.permute.xlu0 0
      %971 = vperm.xlu0 %970, %v903
      %v972 = vpop.permute.xlu0 %971
      %975 = vset.pattern.permute.xlu0 0
      %976 = vperm.xlu0 %975, %v904
      %v977 = vpop.permute.xlu0 %976
      %980 = vset.pattern.permute.xlu0 0
      %981 = vperm.xlu0 %980, %v905
      %v982 = vpop.permute.xlu0 %981
      %985 = vset.pattern.permute.xlu0 0
      %986 = vperm.xlu0 %985, %v906
      %v987 = vpop.permute.xlu0 %986
      %990 = vset.pattern.permute.xlu0 0
      %991 = vperm.xlu0 %990, %v907
      %v992 = vpop.permute.xlu0 %991
      %995 = vset.pattern.permute.xlu0 0
      %996 = vperm.xlu0 %995, %v908
      %v997 = vpop.permute.xlu0 %996
      %1000 = vset.pattern.permute.xlu0 0
      %1001 = vperm.xlu0 %1000, %v909
      %v1002 = vpop.permute.xlu0 %1001
      %1005 = vset.pattern.permute.xlu0 0
      %1006 = vperm.xlu0 %1005, %v910
      %v1007 = vpop.permute.xlu0 %1006
      %1010 = vset.pattern.permute.xlu0 0
      %1011 = vperm.xlu0 %1010, %v911
      %v1012 = vpop.permute.xlu0 %1011
      %1015 = vset.pattern.permute.xlu0 0
      %1016 = vperm.xlu0 %1015, %v912
      %v1017 = vpop.permute.xlu0 %1016
      %1020 = vset.pattern.permute.xlu0 0
      %1021 = vperm.xlu0 %1020, %v913
      %v1022 = vpop.permute.xlu0 %1021
      %1025 = vset.pattern.permute.xlu0 0
      %1026 = vperm.xlu0 %1025, %v914
      %v1027 = vpop.permute.xlu0 %1026
      %1030 = vset.pattern.permute.xlu0 0
      %1031 = vperm.xlu0 %1030, %v915
      %v1032 = vpop.permute.xlu0 %1031
      %1035 = vset.pattern.permute.xlu0 0
      %1036 = vperm.xlu0 %1035, %v916
      %v1037 = vpop.permute.xlu0 %1036
      %1040 = vset.pattern.permute.xlu0 0
      %1041 = vperm.xlu0 %1040, %v917
      %v1042 = vpop.permute.xlu0 %1041
      %1045 = vset.pattern.permute.xlu0 0
      %1046 = vperm.xlu0 %1045, %v918
      %v1047 = vpop.permute.xlu0 %1046
      %1050 = vset.pattern.permute.xlu0 0
      %1051 = vperm.xlu0 %1050, %v919
      %v1052 = vpop.permute.xlu0 %1051
      %1055 = vset.pattern.permute.xlu0 0
      %1056 = vperm.xlu0 %1055, %v920
      %v1057 = vpop.permute.xlu0 %1056
      %1060 = vset.pattern.permute.xlu0 0
      %1061 = vperm.xlu0 %1060, %v921
      %v1062 = vpop.permute.xlu0 %1061
      %1065 = vset.pattern.permute.xlu0 0
      %1066 = vperm.xlu0 %1065, %v922
      %v1067 = vpop.permute.xlu0 %1066
      %1070 = vset.pattern.permute.xlu0 0
      %1071 = vperm.xlu0 %1070, %v923
      %v1072 = vpop.permute.xlu0 %1071
      %v1074 = vmul.f32 %v660, %v927
      %v1075 = vmul.f32 %v661, %v932
      %v1076 = vmul.f32 %v662, %v937
      %v1077 = vmul.f32 %v663, %v942
      %v1078 = vmul.f32 %v664, %v947
      %v1079 = vmul.f32 %v665, %v952
      %v1080 = vmul.f32 %v666, %v957
      %v1081 = vmul.f32 %v667, %v962
      %v1082 = vmul.f32 %v668, %v967
      %v1083 = vmul.f32 %v669, %v972
      %v1084 = vmul.f32 %v670, %v977
      %v1085 = vmul.f32 %v671, %v982
      %v1086 = vmul.f32 %v672, %v987
      %v1087 = vmul.f32 %v673, %v992
      %v1088 = vmul.f32 %v674, %v997
      %v1089 = vmul.f32 %v675, %v1002
      %v1090 = vmul.f32 %v676, %v1007
      %v1091 = vmul.f32 %v677, %v1012
      %v1092 = vmul.f32 %v678, %v1017
      %v1093 = vmul.f32 %v679, %v1022
      %v1094 = vmul.f32 %v680, %v1027
      %v1095 = vmul.f32 %v681, %v1032
      %v1096 = vmul.f32 %v682, %v1037
      %v1097 = vmul.f32 %v683, %v1042
      %v1098 = vmul.f32 %v684, %v1047
      %v1099 = vmul.f32 %v685, %v1052
      %v1100 = vmul.f32 %v686, %v1057
      %v1101 = vmul.f32 %v687, %v1062
      %v1102 = vmul.f32 %v688, %v1067
      %v1103 = vmul.f32 %v689, %v1072
      %vm1104 = vcmask 31744
      %1105 = vst.msk [vmem:[#allocation2] sm:$0xff] %vm1104, 0.0
      %1106 = vst.msk [vmem:[#allocation2 + $0xf8] sm:$0xff] %vm1104, 0.0
      %1107 = vst.msk [vmem:[#allocation2 + $0x8] sm:$0xff] %vm1104, %v1074
      %1108 = vst.msk [vmem:[#allocation2 + $0x10] sm:$0xff] %vm1104, %v1075
      %1109 = vst.msk [vmem:[#allocation2 + $0x18] sm:$0xff] %vm1104, %v1076
      %1110 = vst.msk [vmem:[#allocation2 + $0x20] sm:$0xff] %vm1104, %v1077
      %1111 = vst.msk [vmem:[#allocation2 + $0x28] sm:$0xff] %vm1104, %v1078
      %1112 = vst.msk [vmem:[#allocation2 + $0x30] sm:$0xff] %vm1104, %v1079
      %1113 = vst.msk [vmem:[#allocation2 + $0x38] sm:$0xff] %vm1104, %v1080
      %1114 = vst.msk [vmem:[#allocation2 + $0x40] sm:$0xff] %vm1104, %v1081
      %1115 = vst.msk [vmem:[#allocation2 + $0x48] sm:$0xff] %vm1104, %v1082
      %1116 = vst.msk [vmem:[#allocation2 + $0x50] sm:$0xff] %vm1104, %v1083
      %1117 = vst.msk [vmem:[#allocation2 + $0x58] sm:$0xff] %vm1104, %v1084
      %1118 = vst.msk [vmem:[#allocation2 + $0x60] sm:$0xff] %vm1104, %v1085
      %1119 = vst.msk [vmem:[#allocation2 + $0x68] sm:$0xff] %vm1104, %v1086
      %1120 = vst.msk [vmem:[#allocation2 + $0x70] sm:$0xff] %vm1104, %v1087
      %1121 = vst.msk [vmem:[#allocation2 + $0x78] sm:$0xff] %vm1104, %v1088
      %1122 = vst.msk [vmem:[#allocation2 + $0x80] sm:$0xff] %vm1104, %v1089
      %1123 = vst.msk [vmem:[#allocation2 + $0x88] sm:$0xff] %vm1104, %v1090
      %1124 = vst.msk [vmem:[#allocation2 + $0x90] sm:$0xff] %vm1104, %v1091
      %1125 = vst.msk [vmem:[#allocation2 + $0x98] sm:$0xff] %vm1104, %v1092
      %1126 = vst.msk [vmem:[#allocation2 + $0xa0] sm:$0xff] %vm1104, %v1093
      %1127 = vst.msk [vmem:[#allocation2 + $0xa8] sm:$0xff] %vm1104, %v1094
      %1128 = vst.msk [vmem:[#allocation2 + $0xb0] sm:$0xff] %vm1104, %v1095
      %1129 = vst.msk [vmem:[#allocation2 + $0xb8] sm:$0xff] %vm1104, %v1096
      %1130 = vst.msk [vmem:[#allocation2 + $0xc0] sm:$0xff] %vm1104, %v1097
      %1131 = vst.msk [vmem:[#allocation2 + $0xc8] sm:$0xff] %vm1104, %v1098
      %1132 = vst.msk [vmem:[#allocation2 + $0xd0] sm:$0xff] %vm1104, %v1099
      %1133 = vst.msk [vmem:[#allocation2 + $0xd8] sm:$0xff] %vm1104, %v1100
      %1134 = vst.msk [vmem:[#allocation2 + $0xe0] sm:$0xff] %vm1104, %v1101
      %1135 = vst.msk [vmem:[#allocation2 + $0xe8] sm:$0xff] %vm1104, %v1102
      %1136 = vst.msk [vmem:[#allocation2 + $0xf0] sm:$0xff] %vm1104, %v1103
      %v1137 = vld [vmem:[#allocation2 + $0x7] sm:$0xff]
      %v1138 = vld [vmem:[#allocation2 + $0xf] sm:$0xff]
      %v1139 = vld [vmem:[#allocation2 + $0x17] sm:$0xff]
      %v1140 = vld [vmem:[#allocation2 + $0x1f] sm:$0xff]
      %v1141 = vld [vmem:[#allocation2 + $0x27] sm:$0xff]
      %v1142 = vld [vmem:[#allocation2 + $0x2f] sm:$0xff]
      %v1143 = vld [vmem:[#allocation2 + $0x37] sm:$0xff]
      %v1144 = vld [vmem:[#allocation2 + $0x3f] sm:$0xff]
      %v1145 = vld [vmem:[#allocation2 + $0x47] sm:$0xff]
      %v1146 = vld [vmem:[#allocation2 + $0x4f] sm:$0xff]
      %v1147 = vld [vmem:[#allocation2 + $0x57] sm:$0xff]
      %v1148 = vld [vmem:[#allocation2 + $0x5f] sm:$0xff]
      %v1149 = vld [vmem:[#allocation2 + $0x67] sm:$0xff]
      %v1150 = vld [vmem:[#allocation2 + $0x6f] sm:$0xff]
      %v1151 = vld [vmem:[#allocation2 + $0x77] sm:$0xff]
      %v1152 = vld [vmem:[#allocation2 + $0x7f] sm:$0xff]
      %v1153 = vld [vmem:[#allocation2 + $0x87] sm:$0xff]
      %v1154 = vld [vmem:[#allocation2 + $0x8f] sm:$0xff]
      %v1155 = vld [vmem:[#allocation2 + $0x97] sm:$0xff]
      %v1156 = vld [vmem:[#allocation2 + $0x9f] sm:$0xff]
      %v1157 = vld [vmem:[#allocation2 + $0xa7] sm:$0xff]
      %v1158 = vld [vmem:[#allocation2 + $0xaf] sm:$0xff]
      %v1159 = vld [vmem:[#allocation2 + $0xb7] sm:$0xff]
      %v1160 = vld [vmem:[#allocation2 + $0xbf] sm:$0xff]
      %v1161 = vld [vmem:[#allocation2 + $0xc7] sm:$0xff]
      %v1162 = vld [vmem:[#allocation2 + $0xcf] sm:$0xff]
      %v1163 = vld [vmem:[#allocation2 + $0xd7] sm:$0xff]
      %v1164 = vld [vmem:[#allocation2 + $0xdf] sm:$0xff]
      %v1165 = vld [vmem:[#allocation2 + $0xe7] sm:$0xff]
      %v1166 = vld [vmem:[#allocation2 + $0xef] sm:$0xff]
      %v1167 = vld [vmem:[#allocation2 + $0x9] sm:$0xff]
      %v1168 = vld [vmem:[#allocation2 + $0x11] sm:$0xff]
      %v1169 = vld [vmem:[#allocation2 + $0x19] sm:$0xff]
      %v1170 = vld [vmem:[#allocation2 + $0x21] sm:$0xff]
      %v1171 = vld [vmem:[#allocation2 + $0x29] sm:$0xff]
      %v1172 = vld [vmem:[#allocation2 + $0x31] sm:$0xff]
      %v1173 = vld [vmem:[#allocation2 + $0x39] sm:$0xff]
      %v1174 = vld [vmem:[#allocation2 + $0x41] sm:$0xff]
      %v1175 = vld [vmem:[#allocation2 + $0x49] sm:$0xff]
      %v1176 = vld [vmem:[#allocation2 + $0x51] sm:$0xff]
      %v1177 = vld [vmem:[#allocation2 + $0x59] sm:$0xff]
      %v1178 = vld [vmem:[#allocation2 + $0x61] sm:$0xff]
      %v1179 = vld [vmem:[#allocation2 + $0x69] sm:$0xff]
      %v1180 = vld [vmem:[#allocation2 + $0x71] sm:$0xff]
      %v1181 = vld [vmem:[#allocation2 + $0x79] sm:$0xff]
      %v1182 = vld [vmem:[#allocation2 + $0x81] sm:$0xff]
      %v1183 = vld [vmem:[#allocation2 + $0x89] sm:$0xff]
      %v1184 = vld [vmem:[#allocation2 + $0x91] sm:$0xff]
      %v1185 = vld [vmem:[#allocation2 + $0x99] sm:$0xff]
      %v1186 = vld [vmem:[#allocation2 + $0xa1] sm:$0xff]
      %v1187 = vld [vmem:[#allocation2 + $0xa9] sm:$0xff]
      %v1188 = vld [vmem:[#allocation2 + $0xb1] sm:$0xff]
      %v1189 = vld [vmem:[#allocation2 + $0xb9] sm:$0xff]
      %v1190 = vld [vmem:[#allocation2 + $0xc1] sm:$0xff]
      %v1191 = vld [vmem:[#allocation2 + $0xc9] sm:$0xff]
      %v1192 = vld [vmem:[#allocation2 + $0xd1] sm:$0xff]
      %v1193 = vld [vmem:[#allocation2 + $0xd9] sm:$0xff]
      %v1194 = vld [vmem:[#allocation2 + $0xe1] sm:$0xff]
      %v1195 = vld [vmem:[#allocation2 + $0xe9] sm:$0xff]
      %v1196 = vld [vmem:[#allocation2 + $0xf1] sm:$0xff]
      %1227 = vrot.lane.b32.xlu0 %v1074, 4
      %v1228 = vpop.permute.xlu0 %1227
      %1229 = vrot.lane.b32.xlu0 %v1075, 4
      %v1230 = vpop.permute.xlu0 %1229
      %1231 = vrot.lane.b32.xlu0 %v1076, 4
      %v1232 = vpop.permute.xlu0 %1231
      %1233 = vrot.lane.b32.xlu0 %v1077, 4
      %v1234 = vpop.permute.xlu0 %1233
      %1235 = vrot.lane.b32.xlu0 %v1078, 4
      %v1236 = vpop.permute.xlu0 %1235
      %1237 = vrot.lane.b32.xlu0 %v1079, 4
      %v1238 = vpop.permute.xlu0 %1237
      %1239 = vrot.lane.b32.xlu0 %v1080, 4
      %v1240 = vpop.permute.xlu0 %1239
      %1241 = vrot.lane.b32.xlu0 %v1081, 4
      %v1242 = vpop.permute.xlu0 %1241
      %1243 = vrot.lane.b32.xlu0 %v1082, 4
      %v1244 = vpop.permute.xlu0 %1243
      %1245 = vrot.lane.b32.xlu0 %v1083, 4
      %v1246 = vpop.permute.xlu0 %1245
      %1247 = vrot.lane.b32.xlu0 %v1084, 4
      %v1248 = vpop.permute.xlu0 %1247
      %1249 = vrot.lane.b32.xlu0 %v1085, 4
      %v1250 = vpop.permute.xlu0 %1249
      %1251 = vrot.lane.b32.xlu0 %v1086, 4
      %v1252 = vpop.permute.xlu0 %1251
      %1253 = vrot.lane.b32.xlu0 %v1087, 4
      %v1254 = vpop.permute.xlu0 %1253
      %1255 = vrot.lane.b32.xlu0 %v1088, 4
      %v1256 = vpop.permute.xlu0 %1255
      %1257 = vrot.lane.b32.xlu0 %v1089, 4
      %v1258 = vpop.permute.xlu0 %1257
      %1259 = vrot.lane.b32.xlu0 %v1090, 4
      %v1260 = vpop.permute.xlu0 %1259
      %1261 = vrot.lane.b32.xlu0 %v1091, 4
      %v1262 = vpop.permute.xlu0 %1261
      %1263 = vrot.lane.b32.xlu0 %v1092, 4
      %v1264 = vpop.permute.xlu0 %1263
      %1265 = vrot.lane.b32.xlu0 %v1093, 4
      %v1266 = vpop.permute.xlu0 %1265
      %1267 = vrot.lane.b32.xlu0 %v1094, 4
      %v1268 = vpop.permute.xlu0 %1267
      %1269 = vrot.lane.b32.xlu0 %v1095, 4
      %v1270 = vpop.permute.xlu0 %1269
      %1271 = vrot.lane.b32.xlu0 %v1096, 4
      %v1272 = vpop.permute.xlu0 %1271
      %1273 = vrot.lane.b32.xlu0 %v1097, 4
      %v1274 = vpop.permute.xlu0 %1273
      %1275 = vrot.lane.b32.xlu0 %v1098, 4
      %v1276 = vpop.permute.xlu0 %1275
      %1277 = vrot.lane.b32.xlu0 %v1099, 4
      %v1278 = vpop.permute.xlu0 %1277
      %1279 = vrot.lane.b32.xlu0 %v1100, 4
      %v1280 = vpop.permute.xlu0 %1279
      %1281 = vrot.lane.b32.xlu0 %v1101, 4
      %v1282 = vpop.permute.xlu0 %1281
      %1283 = vrot.lane.b32.xlu0 %v1102, 4
      %v1284 = vpop.permute.xlu0 %1283
      %1285 = vrot.lane.b32.xlu0 %v1103, 4
      %v1286 = vpop.permute.xlu0 %1285
      %1347 = vrot.lane.b32.xlu0 %v1167, 8
      %v1348 = vpop.permute.xlu0 %1347
      %1349 = vrot.lane.b32.xlu0 %v1168, 8
      %v1350 = vpop.permute.xlu0 %1349
      %1351 = vrot.lane.b32.xlu0 %v1169, 8
      %v1352 = vpop.permute.xlu0 %1351
      %1353 = vrot.lane.b32.xlu0 %v1170, 8
      %v1354 = vpop.permute.xlu0 %1353
      %1355 = vrot.lane.b32.xlu0 %v1171, 8
      %v1356 = vpop.permute.xlu0 %1355
      %1357 = vrot.lane.b32.xlu0 %v1172, 8
      %v1358 = vpop.permute.xlu0 %1357
      %1359 = vrot.lane.b32.xlu0 %v1173, 8
      %v1360 = vpop.permute.xlu0 %1359
      %1361 = vrot.lane.b32.xlu0 %v1174, 8
      %v1362 = vpop.permute.xlu0 %1361
      %1363 = vrot.lane.b32.xlu0 %v1175, 8
      %v1364 = vpop.permute.xlu0 %1363
      %1365 = vrot.lane.b32.xlu0 %v1176, 8
      %v1366 = vpop.permute.xlu0 %1365
      %1367 = vrot.lane.b32.xlu0 %v1177, 8
      %v1368 = vpop.permute.xlu0 %1367
      %1369 = vrot.lane.b32.xlu0 %v1178, 8
      %v1370 = vpop.permute.xlu0 %1369
      %1371 = vrot.lane.b32.xlu0 %v1179, 8
      %v1372 = vpop.permute.xlu0 %1371
      %1373 = vrot.lane.b32.xlu0 %v1180, 8
      %v1374 = vpop.permute.xlu0 %1373
      %1375 = vrot.lane.b32.xlu0 %v1181, 8
      %v1376 = vpop.permute.xlu0 %1375
      %1377 = vrot.lane.b32.xlu0 %v1182, 8
      %v1378 = vpop.permute.xlu0 %1377
      %1379 = vrot.lane.b32.xlu0 %v1183, 8
      %v1380 = vpop.permute.xlu0 %1379
      %1381 = vrot.lane.b32.xlu0 %v1184, 8
      %v1382 = vpop.permute.xlu0 %1381
      %1383 = vrot.lane.b32.xlu0 %v1185, 8
      %v1384 = vpop.permute.xlu0 %1383
      %1385 = vrot.lane.b32.xlu0 %v1186, 8
      %v1386 = vpop.permute.xlu0 %1385
      %1387 = vrot.lane.b32.xlu0 %v1187, 8
      %v1388 = vpop.permute.xlu0 %1387
      %1389 = vrot.lane.b32.xlu0 %v1188, 8
      %v1390 = vpop.permute.xlu0 %1389
      %1391 = vrot.lane.b32.xlu0 %v1189, 8
      %v1392 = vpop.permute.xlu0 %1391
      %1393 = vrot.lane.b32.xlu0 %v1190, 8
      %v1394 = vpop.permute.xlu0 %1393
      %1395 = vrot.lane.b32.xlu0 %v1191, 8
      %v1396 = vpop.permute.xlu0 %1395
      %1397 = vrot.lane.b32.xlu0 %v1192, 8
      %v1398 = vpop.permute.xlu0 %1397
      %1399 = vrot.lane.b32.xlu0 %v1193, 8
      %v1400 = vpop.permute.xlu0 %1399
      %1401 = vrot.lane.b32.xlu0 %v1194, 8
      %v1402 = vpop.permute.xlu0 %1401
      %1403 = vrot.lane.b32.xlu0 %v1195, 8
      %v1404 = vpop.permute.xlu0 %1403
      %1405 = vrot.lane.b32.xlu0 %v1196, 8
      %v1406 = vpop.permute.xlu0 %1405
      %v1437 = vsel %vm1104, %v1137, %v1228
      %v1438 = vsel %vm1104, %v1138, %v1230
      %v1439 = vsel %vm1104, %v1139, %v1232
      %v1440 = vsel %vm1104, %v1140, %v1234
      %v1441 = vsel %vm1104, %v1141, %v1236
      %v1442 = vsel %vm1104, %v1142, %v1238
      %v1443 = vsel %vm1104, %v1143, %v1240
      %v1444 = vsel %vm1104, %v1144, %v1242
      %v1445 = vsel %vm1104, %v1145, %v1244
      %v1446 = vsel %vm1104, %v1146, %v1246
      %v1447 = vsel %vm1104, %v1147, %v1248
      %v1448 = vsel %vm1104, %v1148, %v1250
      %v1449 = vsel %vm1104, %v1149, %v1252
      %v1450 = vsel %vm1104, %v1150, %v1254
      %v1451 = vsel %vm1104, %v1151, %v1256
      %v1452 = vsel %vm1104, %v1152, %v1258
      %v1453 = vsel %vm1104, %v1153, %v1260
      %v1454 = vsel %vm1104, %v1154, %v1262
      %v1455 = vsel %vm1104, %v1155, %v1264
      %v1456 = vsel %vm1104, %v1156, %v1266
      %v1457 = vsel %vm1104, %v1157, %v1268
      %v1458 = vsel %vm1104, %v1158, %v1270
      %v1459 = vsel %vm1104, %v1159, %v1272
      %v1460 = vsel %vm1104, %v1160, %v1274
      %v1461 = vsel %vm1104, %v1161, %v1276
      %v1462 = vsel %vm1104, %v1162, %v1278
      %v1463 = vsel %vm1104, %v1163, %v1280
      %v1464 = vsel %vm1104, %v1164, %v1282
      %v1465 = vsel %vm1104, %v1165, %v1284
      %v1466 = vsel %vm1104, %v1166, %v1286
      %vm1467 = vcmask 64512
      %v1468 = vsel %vm1467, %v1437, %v1348
      %v1469 = vsel %vm1467, %v1438, %v1350
      %v1470 = vsel %vm1467, %v1439, %v1352
      %v1471 = vsel %vm1467, %v1440, %v1354
      %v1472 = vsel %vm1467, %v1441, %v1356
      %v1473 = vsel %vm1467, %v1442, %v1358
      %v1474 = vsel %vm1467, %v1443, %v1360
      %v1475 = vsel %vm1467, %v1444, %v1362
      %v1476 = vsel %vm1467, %v1445, %v1364
      %v1477 = vsel %vm1467, %v1446, %v1366
      %v1478 = vsel %vm1467, %v1447, %v1368
      %v1479 = vsel %vm1467, %v1448, %v1370
      %v1480 = vsel %vm1467, %v1449, %v1372
      %v1481 = vsel %vm1467, %v1450, %v1374
      %v1482 = vsel %vm1467, %v1451, %v1376
      %v1483 = vsel %vm1467, %v1452, %v1378
      %v1484 = vsel %vm1467, %v1453, %v1380
      %v1485 = vsel %vm1467, %v1454, %v1382
      %v1486 = vsel %vm1467, %v1455, %v1384
      %v1487 = vsel %vm1467, %v1456, %v1386
      %v1488 = vsel %vm1467, %v1457, %v1388
      %v1489 = vsel %vm1467, %v1458, %v1390
      %v1490 = vsel %vm1467, %v1459, %v1392
      %v1491 = vsel %vm1467, %v1460, %v1394
      %v1492 = vsel %vm1467, %v1461, %v1396
      %v1493 = vsel %vm1467, %v1462, %v1398
      %v1494 = vsel %vm1467, %v1463, %v1400
      %v1495 = vsel %vm1467, %v1464, %v1402
      %v1496 = vsel %vm1467, %v1465, %v1404
      %v1497 = vsel %vm1467, %v1466, %v1406
      %vm1498 = vcmask 97280
      %1499 = vst.msk [vmem:[#allocation3] sm:$0xff] %vm1498, %v1468
      %1500 = vst.msk [vmem:[#allocation3 + $0x8] sm:$0xff] %vm1498, %v1469
      %1501 = vst.msk [vmem:[#allocation3 + $0x10] sm:$0xff] %vm1498, %v1470
      %1502 = vst.msk [vmem:[#allocation3 + $0x18] sm:$0xff] %vm1498, %v1471
      %1503 = vst.msk [vmem:[#allocation3 + $0x20] sm:$0xff] %vm1498, %v1472
      %1504 = vst.msk [vmem:[#allocation3 + $0x28] sm:$0xff] %vm1498, %v1473
      %1505 = vst.msk [vmem:[#allocation3 + $0x30] sm:$0xff] %vm1498, %v1474
      %1506 = vst.msk [vmem:[#allocation3 + $0x38] sm:$0xff] %vm1498, %v1475
      %1507 = vst.msk [vmem:[#allocation3 + $0x40] sm:$0xff] %vm1498, %v1476
      %1508 = vst.msk [vmem:[#allocation3 + $0x48] sm:$0xff] %vm1498, %v1477
      %1509 = vst.msk [vmem:[#allocation3 + $0x50] sm:$0xff] %vm1498, %v1478
      %1510 = vst.msk [vmem:[#allocation3 + $0x58] sm:$0xff] %vm1498, %v1479
      %1511 = vst.msk [vmem:[#allocation3 + $0x60] sm:$0xff] %vm1498, %v1480
      %1512 = vst.msk [vmem:[#allocation3 + $0x68] sm:$0xff] %vm1498, %v1481
      %1513 = vst.msk [vmem:[#allocation3 + $0x70] sm:$0xff] %vm1498, %v1482
      %1514 = vst.msk [vmem:[#allocation3 + $0x78] sm:$0xff] %vm1498, %v1483
      %1515 = vst.msk [vmem:[#allocation3 + $0x80] sm:$0xff] %vm1498, %v1484
      %1516 = vst.msk [vmem:[#allocation3 + $0x88] sm:$0xff] %vm1498, %v1485
      %1517 = vst.msk [vmem:[#allocation3 + $0x90] sm:$0xff] %vm1498, %v1486
      %1518 = vst.msk [vmem:[#allocation3 + $0x98] sm:$0xff] %vm1498, %v1487
      %1519 = vst.msk [vmem:[#allocation3 + $0xa0] sm:$0xff] %vm1498, %v1488
      %1520 = vst.msk [vmem:[#allocation3 + $0xa8] sm:$0xff] %vm1498, %v1489
      %1521 = vst.msk [vmem:[#allocation3 + $0xb0] sm:$0xff] %vm1498, %v1490
      %1522 = vst.msk [vmem:[#allocation3 + $0xb8] sm:$0xff] %vm1498, %v1491
      %1523 = vst.msk [vmem:[#allocation3 + $0xc0] sm:$0xff] %vm1498, %v1492
      %1524 = vst.msk [vmem:[#allocation3 + $0xc8] sm:$0xff] %vm1498, %v1493
      %1525 = vst.msk [vmem:[#allocation3 + $0xd0] sm:$0xff] %vm1498, %v1494
      %1526 = vst.msk [vmem:[#allocation3 + $0xd8] sm:$0xff] %vm1498, %v1495
      %1527 = vst.msk [vmem:[#allocation3 + $0xe0] sm:$0xff] %vm1498, %v1496
      %1528 = vst.msk [vmem:[#allocation3 + $0xe8] sm:$0xff] %vm1498, %v1497
      %v1529 = vld [vmem:[#allocation3] sm:$0xff]
      %v1530 = vld [vmem:[#allocation3 + $0x8] sm:$0xff]
      %v1531 = vld [vmem:[#allocation3 + $0x10] sm:$0xff]
      %v1532 = vld [vmem:[#allocation3 + $0x18] sm:$0xff]
      %v1533 = vld [vmem:[#allocation3 + $0x20] sm:$0xff]
      %v1534 = vld [vmem:[#allocation3 + $0x28] sm:$0xff]
      %v1535 = vld [vmem:[#allocation3 + $0x30] sm:$0xff]
      %v1536 = vld [vmem:[#allocation3 + $0x38] sm:$0xff]
      %v1537 = vld [vmem:[#allocation3 + $0x40] sm:$0xff]
      %v1538 = vld [vmem:[#allocation3 + $0x48] sm:$0xff]
      %v1539 = vld [vmem:[#allocation3 + $0x50] sm:$0xff]
      %v1540 = vld [vmem:[#allocation3 + $0x58] sm:$0xff]
      %v1541 = vld [vmem:[#allocation3 + $0x60] sm:$0xff]
      %v1542 = vld [vmem:[#allocation3 + $0x68] sm:$0xff]
      %v1543 = vld [vmem:[#allocation3 + $0x70] sm:$0xff]
      %v1544 = vld [vmem:[#allocation3 + $0x78] sm:$0xff]
      %v1545 = vld [vmem:[#allocation3 + $0x80] sm:$0xff]
      %v1546 = vld [vmem:[#allocation3 + $0x88] sm:$0xff]
      %v1547 = vld [vmem:[#allocation3 + $0x90] sm:$0xff]
      %v1548 = vld [vmem:[#allocation3 + $0x98] sm:$0xff]
      %v1549 = vld [vmem:[#allocation3 + $0xa0] sm:$0xff]
      %v1550 = vld [vmem:[#allocation3 + $0xa8] sm:$0xff]
      %v1551 = vld [vmem:[#allocation3 + $0xb0] sm:$0xff]
      %v1552 = vld [vmem:[#allocation3 + $0xb8] sm:$0xff]
      %v1553 = vld [vmem:[%s3] sm:$0xff]
      %v1554 = vld [vmem:[%s3 + $0x8] sm:$0xf]
      %v1555 = vld [vmem:[#allocation3 + $0xc0] sm:$0xff]
      %v1556 = vld [vmem:[#allocation3 + $0xc8] sm:$0xff]
      %v1557 = vld [vmem:[#allocation3 + $0xd0] sm:$0xff]
      %s1558 = scalar_lea.vmem %s3, 16
      %v1559 = vld [vmem:[%s1558] sm:$0xff]
      %v1560 = vld [vmem:[%s1558 + $0x8] sm:$0xf]
      %v1562 = vsel %vm1498, %v1532, 0
      %v1565 = vsel %vm1498, %v1533, 0
      %v1568 = vsel %vm1498, %v1534, 0
      %v1571 = vsel %vm1498, %v1535, 0
      %v1574 = vsel %vm1498, %v1536, 0
      %v1577 = vsel %vm1498, %v1537, 0
      %v1580 = vsel %vm1498, %v1538, 0
      %v1583 = vsel %vm1498, %v1539, 0
      %v1586 = vsel %vm1498, %v1540, 0
      %v1589 = vsel %vm1498, %v1541, 0
      %v1592 = vsel %vm1498, %v1542, 0
      %v1595 = vsel %vm1498, %v1543, 0
      %v1598 = vsel %vm1498, %v1544, 0
      %v1601 = vsel %vm1498, %v1545, 0
      %v1604 = vsel %vm1498, %v1546, 0
      %v1607 = vsel %vm1498, %v1547, 0
      %v1610 = vsel %vm1498, %v1548, 0
      %v1613 = vsel %vm1498, %v1549, 0
      %v1616 = vsel %vm1498, %v1550, 0
      %v1619 = vsel %vm1498, %v1551, 0
      %v1622 = vsel %vm1498, %v1552, 0
      %v1625 = vsel %vm1498, %v1555, 0
      %v1628 = vsel %vm1498, %v1556, 0
      %v1631 = vsel %vm1498, %v1557, 0
      %vm1633 = vcmask 1043456
      %v1635 = vsel %vm1633, %v1560, 0
      %1637 = vmatprep.subr.mxu0 0.0
      %1638 = vmatpush1.msra.mxu0 0.0
      %1639 = vmatprep.subr.mxu0 0.0
      %1640 = vmatpush1.msra.mxu0 0.0
      %1641 = vmatprep.subr.mxu0 0.0
      %1642 = vmatpush1.msra.mxu0 0.0
      %1643 = vmatprep.subr.mxu0 0.0
      %1644 = vmatpush1.msra.mxu0 0.0
      %1645 = vmatprep.subr.mxu0 0.0
      %1646 = vmatpush1.msra.mxu0 0.0
      %1647 = vmatprep.subr.mxu0 0.0
      %1648 = vmatpush1.msra.mxu0 0.0
      %1649 = vmatprep.subr.mxu0 0.0
      %1650 = vmatpush1.msra.mxu0 0.0
      %1651 = vmatprep.subr.mxu0 0.0
      %1652 = vmatpush1.msra.mxu0 0.0
      %1653 = vmatprep.subr.mxu0 0.0
      %1654 = vmatpush1.msra.mxu0 0.0
      %1655 = vmatprep.subr.mxu0 0.0
      %1656 = vmatpush1.msra.mxu0 0.0
      %1657 = vmatprep.subr.mxu0 0.0
      %1658 = vmatpush1.msra.mxu0 0.0
      %1659 = vmatprep.subr.mxu0 0.0
      %1660 = vmatpush1.msra.mxu0 0.0
      %1661 = vmatprep.subr.mxu0 0.0
      %1662 = vmatpush1.msra.mxu0 0.0
      %1663 = vmatprep.subr.mxu0 0.0
      %1664 = vmatpush1.msra.mxu0 0.0
      %1665 = vmatprep.subr.mxu0 0.0
      %1666 = vmatpush1.msra.mxu0 %v1635
      %1667 = vmatprep.subr.mxu0 0.0
      %1668 = vmatpush1.msra.mxu0 %v1559
      %1669 = vmatprep.subr.mxu0 0.0
      %1670 = vmatpush2.msra.mxu0 0.0
      %1671 = vmatprep.subr.mxu0 0.0
      %1672 = vmatpush2.msra.mxu0 0.0
      %1673 = vmatprep.subr.mxu0 0.0
      %1674 = vmatpush2.msra.mxu0 0.0
      %1675 = vmatprep.subr.mxu0 0.0
      %1676 = vmatpush2.msra.mxu0 0.0
      %1677 = vmatprep.subr.mxu0 0.0
      %1678 = vmatpush2.msra.mxu0 0.0
      %1679 = vmatprep.subr.mxu0 0.0
      %1680 = vmatpush2.msra.mxu0 0.0
      %1681 = vmatprep.subr.mxu0 0.0
      %1682 = vmatpush2.msra.mxu0 0.0
      %1683 = vmatprep.subr.mxu0 0.0
      %1684 = vmatpush2.msra.mxu0 0.0
      %1685 = vmatprep.subr.mxu0 0.0
      %1686 = vmatpush2.msra.mxu0 0.0
      %1687 = vmatprep.subr.mxu0 0.0
      %1688 = vmatpush2.msra.mxu0 0.0
      %1689 = vmatprep.subr.mxu0 0.0
      %1690 = vmatpush2.msra.mxu0 0.0
      %1691 = vmatprep.subr.mxu0 0.0
      %1692 = vmatpush2.msra.mxu0 0.0
      %1693 = vmatprep.subr.mxu0 0.0
      %1694 = vmatpush2.msra.mxu0 0.0
      %1695 = vmatprep.subr.mxu0 0.0
      %1696 = vmatpush2.msra.mxu0 0.0
      %1697 = vmatprep.subr.mxu0 0.0
      %1698 = vmatpush2.msra.mxu0 0.0
      %1699 = vmatprep.subr.mxu0 0.0
      %1700 = vmatpush2.msra.mxu0 0.0
      %1701 = vmatprep.mubr.f32.mxu0 0.0
      %1702 = vmatmul.mubr.f32.gmra.mxu0 %v1562
      %v1703 = vpop.f32.mrf.mxu0
      %v1704 = vadd.f32 0.0, %v1703
      %v1705 = vpop.f32.mrf.mxu0
      %1706 = vmatprep.mubr.f32.mxu0 0.0
      %1707 = vmatmul.mubr.f32.gmra.mxu0 %v1565
      %v1708 = vpop.f32.mrf.mxu0
      %v1709 = vadd.f32 0.0, %v1708
      %v1710 = vpop.f32.mrf.mxu0
      %1711 = vmatprep.mubr.f32.mxu0 0.0
      %1712 = vmatmul.mubr.f32.gmra.mxu0 %v1568
      %v1713 = vpop.f32.mrf.mxu0
      %v1714 = vadd.f32 0.0, %v1713
      %v1715 = vpop.f32.mrf.mxu0
      %1716 = vmatprep.mubr.f32.mxu0 0.0
      %1717 = vmatmul.mubr.f32.gmra.mxu0 %v1571
      %v1718 = vpop.f32.mrf.mxu0
      %v1719 = vadd.f32 0.0, %v1718
      %v1720 = vpop.f32.mrf.mxu0
      %1721 = vmatprep.mubr.f32.mxu0 0.0
      %1722 = vmatmul.mubr.f32.gmra.mxu0 %v1574
      %v1723 = vpop.f32.mrf.mxu0
      %v1724 = vadd.f32 0.0, %v1723
      %v1725 = vpop.f32.mrf.mxu0
      %1726 = vmatprep.mubr.f32.mxu0 0.0
      %1727 = vmatmul.mubr.f32.gmra.mxu0 %v1577
      %v1728 = vpop.f32.mrf.mxu0
      %v1729 = vadd.f32 0.0, %v1728
      %v1730 = vpop.f32.mrf.mxu0
      %1731 = vmatprep.mubr.f32.mxu0 0.0
      %1732 = vmatmul.mubr.f32.gmra.mxu0 %v1580
      %v1733 = vpop.f32.mrf.mxu0
      %v1734 = vadd.f32 0.0, %v1733
      %v1735 = vpop.f32.mrf.mxu0
      %1736 = vmatprep.mubr.f32.mxu0 0.0
      %1737 = vmatmul.mubr.f32.gmra.mxu0 %v1583
      %v1738 = vpop.f32.mrf.mxu0
      %v1739 = vadd.f32 0.0, %v1738
      %v1740 = vpop.f32.mrf.mxu0
      %1741 = vmatprep.mubr.f32.mxu0 0.0
      %1742 = vmatmul.mubr.f32.gmra.mxu0 %v1586
      %v1743 = vpop.f32.mrf.mxu0
      %v1744 = vadd.f32 0.0, %v1743
      %v1745 = vpop.f32.mrf.mxu0
      %1746 = vmatprep.mubr.f32.mxu0 0.0
      %1747 = vmatmul.mubr.f32.gmra.mxu0 %v1589
      %v1748 = vpop.f32.mrf.mxu0
      %v1749 = vadd.f32 0.0, %v1748
      %v1750 = vpop.f32.mrf.mxu0
      %1751 = vmatprep.mubr.f32.mxu0 0.0
      %1752 = vmatmul.mubr.f32.gmra.mxu0 %v1592
      %v1753 = vpop.f32.mrf.mxu0
      %v1754 = vadd.f32 0.0, %v1753
      %v1755 = vpop.f32.mrf.mxu0
      %1756 = vmatprep.mubr.f32.mxu0 0.0
      %1757 = vmatmul.mubr.f32.gmra.mxu0 %v1595
      %v1758 = vpop.f32.mrf.mxu0
      %v1759 = vadd.f32 0.0, %v1758
      %v1760 = vpop.f32.mrf.mxu0
      %1761 = vmatprep.mubr.f32.mxu0 0.0
      %1762 = vmatmul.mubr.f32.gmra.mxu0 %v1598
      %v1763 = vpop.f32.mrf.mxu0
      %v1764 = vadd.f32 0.0, %v1763
      %v1765 = vpop.f32.mrf.mxu0
      %1766 = vmatprep.mubr.f32.mxu0 0.0
      %1767 = vmatmul.mubr.f32.gmra.mxu0 %v1601
      %v1768 = vpop.f32.mrf.mxu0
      %v1769 = vadd.f32 0.0, %v1768
      %v1770 = vpop.f32.mrf.mxu0
      %1771 = vmatprep.mubr.f32.mxu0 0.0
      %1772 = vmatmul.mubr.f32.gmra.mxu0 %v1604
      %v1773 = vpop.f32.mrf.mxu0
      %v1774 = vadd.f32 0.0, %v1773
      %v1775 = vpop.f32.mrf.mxu0
      %1776 = vmatprep.mubr.f32.mxu0 0.0
      %1777 = vmatmul.mubr.f32.gmra.mxu0 %v1607
      %v1778 = vpop.f32.mrf.mxu0
      %v1779 = vadd.f32 0.0, %v1778
      %v1780 = vpop.f32.mrf.mxu0
      %1781 = vmatprep.mubr.f32.mxu0 0.0
      %1782 = vmatmul.mubr.f32.gmra.mxu0 %v1610
      %v1783 = vpop.f32.mrf.mxu0
      %v1784 = vadd.f32 0.0, %v1783
      %v1785 = vpop.f32.mrf.mxu0
      %1786 = vmatprep.mubr.f32.mxu0 0.0
      %1787 = vmatmul.mubr.f32.gmra.mxu0 %v1613
      %v1788 = vpop.f32.mrf.mxu0
      %v1789 = vadd.f32 0.0, %v1788
      %v1790 = vpop.f32.mrf.mxu0
      %1791 = vmatprep.mubr.f32.mxu0 0.0
      %1792 = vmatmul.mubr.f32.gmra.mxu0 %v1616
      %v1793 = vpop.f32.mrf.mxu0
      %v1794 = vadd.f32 0.0, %v1793
      %v1795 = vpop.f32.mrf.mxu0
      %1796 = vmatprep.mubr.f32.mxu0 0.0
      %1797 = vmatmul.mubr.f32.gmra.mxu0 %v1619
      %v1798 = vpop.f32.mrf.mxu0
      %v1799 = vadd.f32 0.0, %v1798
      %v1800 = vpop.f32.mrf.mxu0
      %1801 = vmatprep.mubr.f32.mxu0 0.0
      %1802 = vmatmul.mubr.f32.gmra.mxu0 %v1622
      %v1803 = vpop.f32.mrf.mxu0
      %v1804 = vadd.f32 0.0, %v1803
      %v1805 = vpop.f32.mrf.mxu0
      %1806 = vmatprep.mubr.f32.mxu0 0.0
      %1807 = vmatmul.mubr.f32.gmra.mxu0 %v1625
      %v1808 = vpop.f32.mrf.mxu0
      %v1809 = vadd.f32 0.0, %v1808
      %v1810 = vpop.f32.mrf.mxu0
      %1811 = vmatprep.mubr.f32.mxu0 0.0
      %1812 = vmatmul.mubr.f32.gmra.mxu0 %v1628
      %v1813 = vpop.f32.mrf.mxu0
      %v1814 = vadd.f32 0.0, %v1813
      %v1815 = vpop.f32.mrf.mxu0
      %1816 = vmatprep.mubr.f32.mxu0 0.0
      %1817 = vmatmul.mubr.f32.gmra.mxu0 %v1631
      %v1818 = vpop.f32.mrf.mxu0
      %v1819 = vadd.f32 0.0, %v1818
      %v1820 = vpop.f32.mrf.mxu0
      %1821 = vdwg.mxu0
      %v1823 = vsel %vm1498, %v1529, 0
      %v1826 = vsel %vm1498, %v1530, 0
      %v1829 = vsel %vm1498, %v1531, 0
      %v1832 = vsel %vm1633, %v1554, 0
      %1834 = vmatprep.subr.mxu0 0.0
      %1835 = vmatpush1.msra.mxu0 0.0
      %1836 = vmatprep.subr.mxu0 0.0
      %1837 = vmatpush1.msra.mxu0 0.0
      %1838 = vmatprep.subr.mxu0 0.0
      %1839 = vmatpush1.msra.mxu0 0.0
      %1840 = vmatprep.subr.mxu0 0.0
      %1841 = vmatpush1.msra.mxu0 0.0
      %1842 = vmatprep.subr.mxu0 0.0
      %1843 = vmatpush1.msra.mxu0 0.0
      %1844 = vmatprep.subr.mxu0 0.0
      %1845 = vmatpush1.msra.mxu0 0.0
      %1846 = vmatprep.subr.mxu0 0.0
      %1847 = vmatpush1.msra.mxu0 0.0
      %1848 = vmatprep.subr.mxu0 0.0
      %1849 = vmatpush1.msra.mxu0 0.0
      %1850 = vmatprep.subr.mxu0 0.0
      %1851 = vmatpush1.msra.mxu0 0.0
      %1852 = vmatprep.subr.mxu0 0.0
      %1853 = vmatpush1.msra.mxu0 0.0
      %1854 = vmatprep.subr.mxu0 0.0
      %1855 = vmatpush1.msra.mxu0 0.0
      %1856 = vmatprep.subr.mxu0 0.0
      %1857 = vmatpush1.msra.mxu0 0.0
      %1858 = vmatprep.subr.mxu0 0.0
      %1859 = vmatpush1.msra.mxu0 0.0
      %1860 = vmatprep.subr.mxu0 0.0
      %1861 = vmatpush1.msra.mxu0 0.0
      %1862 = vmatprep.subr.mxu0 0.0
      %1863 = vmatpush1.msra.mxu0 %v1832
      %1864 = vmatprep.subr.mxu0 0.0
      %1865 = vmatpush1.msra.mxu0 %v1553
      %1866 = vmatprep.subr.mxu0 0.0
      %1867 = vmatpush2.msra.mxu0 0.0
      %1868 = vmatprep.subr.mxu0 0.0
      %1869 = vmatpush2.msra.mxu0 0.0
      %1870 = vmatprep.subr.mxu0 0.0
      %1871 = vmatpush2.msra.mxu0 0.0
      %1872 = vmatprep.subr.mxu0 0.0
      %1873 = vmatpush2.msra.mxu0 0.0
      %1874 = vmatprep.subr.mxu0 0.0
      %1875 = vmatpush2.msra.mxu0 0.0
      %1876 = vmatprep.subr.mxu0 0.0
      %1877 = vmatpush2.msra.mxu0 0.0
      %1878 = vmatprep.subr.mxu0 0.0
      %1879 = vmatpush2.msra.mxu0 0.0
      %1880 = vmatprep.subr.mxu0 0.0
      %1881 = vmatpush2.msra.mxu0 0.0
      %1882 = vmatprep.subr.mxu0 0.0
      %1883 = vmatpush2.msra.mxu0 0.0
      %1884 = vmatprep.subr.mxu0 0.0
      %1885 = vmatpush2.msra.mxu0 0.0
      %1886 = vmatprep.subr.mxu0 0.0
      %1887 = vmatpush2.msra.mxu0 0.0
      %1888 = vmatprep.subr.mxu0 0.0
      %1889 = vmatpush2.msra.mxu0 0.0
      %1890 = vmatprep.subr.mxu0 0.0
      %1891 = vmatpush2.msra.mxu0 0.0
      %1892 = vmatprep.subr.mxu0 0.0
      %1893 = vmatpush2.msra.mxu0 0.0
      %1894 = vmatprep.subr.mxu0 0.0
      %1895 = vmatpush2.msra.mxu0 0.0
      %1896 = vmatprep.subr.mxu0 0.0
      %1897 = vmatpush2.msra.mxu0 0.0
      %1898 = vmatprep.mubr.f32.mxu0 0.0
      %1899 = vmatmul.mubr.f32.gmra.mxu0 %v1823
      %v1900 = vpop.f32.mrf.mxu0
      %v1901 = vadd.f32 %v1704, %v1900
      %v1902 = vpop.f32.mrf.mxu0
      %1903 = vmatprep.mubr.f32.mxu0 0.0
      %1904 = vmatmul.mubr.f32.gmra.mxu0 %v1826
      %v1905 = vpop.f32.mrf.mxu0
      %v1906 = vadd.f32 %v1709, %v1905
      %v1907 = vpop.f32.mrf.mxu0
      %1908 = vmatprep.mubr.f32.mxu0 0.0
      %1909 = vmatmul.mubr.f32.gmra.mxu0 %v1829
      %v1910 = vpop.f32.mrf.mxu0
      %v1911 = vadd.f32 %v1714, %v1910
      %v1912 = vpop.f32.mrf.mxu0
      %1913 = vmatprep.mubr.f32.mxu0 0.0
      %1914 = vmatmul.mubr.f32.gmra.mxu0 %v1562
      %v1915 = vpop.f32.mrf.mxu0
      %v1916 = vadd.f32 %v1719, %v1915
      %v1917 = vpop.f32.mrf.mxu0
      %1918 = vmatprep.mubr.f32.mxu0 0.0
      %1919 = vmatmul.mubr.f32.gmra.mxu0 %v1565
      %v1920 = vpop.f32.mrf.mxu0
      %v1921 = vadd.f32 %v1724, %v1920
      %v1922 = vpop.f32.mrf.mxu0
      %1923 = vmatprep.mubr.f32.mxu0 0.0
      %1924 = vmatmul.mubr.f32.gmra.mxu0 %v1568
      %v1925 = vpop.f32.mrf.mxu0
      %v1926 = vadd.f32 %v1729, %v1925
      %v1927 = vpop.f32.mrf.mxu0
      %1928 = vmatprep.mubr.f32.mxu0 0.0
      %1929 = vmatmul.mubr.f32.gmra.mxu0 %v1571
      %v1930 = vpop.f32.mrf.mxu0
      %v1931 = vadd.f32 %v1734, %v1930
      %v1932 = vpop.f32.mrf.mxu0
      %1933 = vmatprep.mubr.f32.mxu0 0.0
      %1934 = vmatmul.mubr.f32.gmra.mxu0 %v1574
      %v1935 = vpop.f32.mrf.mxu0
      %v1936 = vadd.f32 %v1739, %v1935
      %v1937 = vpop.f32.mrf.mxu0
      %1938 = vmatprep.mubr.f32.mxu0 0.0
      %1939 = vmatmul.mubr.f32.gmra.mxu0 %v1577
      %v1940 = vpop.f32.mrf.mxu0
      %v1941 = vadd.f32 %v1744, %v1940
      %v1942 = vpop.f32.mrf.mxu0
      %1943 = vmatprep.mubr.f32.mxu0 0.0
      %1944 = vmatmul.mubr.f32.gmra.mxu0 %v1580
      %v1945 = vpop.f32.mrf.mxu0
      %v1946 = vadd.f32 %v1749, %v1945
      %v1947 = vpop.f32.mrf.mxu0
      %1948 = vmatprep.mubr.f32.mxu0 0.0
      %1949 = vmatmul.mubr.f32.gmra.mxu0 %v1583
      %v1950 = vpop.f32.mrf.mxu0
      %v1951 = vadd.f32 %v1754, %v1950
      %v1952 = vpop.f32.mrf.mxu0
      %1953 = vmatprep.mubr.f32.mxu0 0.0
      %1954 = vmatmul.mubr.f32.gmra.mxu0 %v1586
      %v1955 = vpop.f32.mrf.mxu0
      %v1956 = vadd.f32 %v1759, %v1955
      %v1957 = vpop.f32.mrf.mxu0
      %1958 = vmatprep.mubr.f32.mxu0 0.0
      %1959 = vmatmul.mubr.f32.gmra.mxu0 %v1589
      %v1960 = vpop.f32.mrf.mxu0
      %v1961 = vadd.f32 %v1764, %v1960
      %v1962 = vpop.f32.mrf.mxu0
      %1963 = vmatprep.mubr.f32.mxu0 0.0
      %1964 = vmatmul.mubr.f32.gmra.mxu0 %v1592
      %v1965 = vpop.f32.mrf.mxu0
      %v1966 = vadd.f32 %v1769, %v1965
      %v1967 = vpop.f32.mrf.mxu0
      %1968 = vmatprep.mubr.f32.mxu0 0.0
      %1969 = vmatmul.mubr.f32.gmra.mxu0 %v1595
      %v1970 = vpop.f32.mrf.mxu0
      %v1971 = vadd.f32 %v1774, %v1970
      %v1972 = vpop.f32.mrf.mxu0
      %1973 = vmatprep.mubr.f32.mxu0 0.0
      %1974 = vmatmul.mubr.f32.gmra.mxu0 %v1598
      %v1975 = vpop.f32.mrf.mxu0
      %v1976 = vadd.f32 %v1779, %v1975
      %v1977 = vpop.f32.mrf.mxu0
      %1978 = vmatprep.mubr.f32.mxu0 0.0
      %1979 = vmatmul.mubr.f32.gmra.mxu0 %v1601
      %v1980 = vpop.f32.mrf.mxu0
      %v1981 = vadd.f32 %v1784, %v1980
      %v1982 = vpop.f32.mrf.mxu0
      %1983 = vmatprep.mubr.f32.mxu0 0.0
      %1984 = vmatmul.mubr.f32.gmra.mxu0 %v1604
      %v1985 = vpop.f32.mrf.mxu0
      %v1986 = vadd.f32 %v1789, %v1985
      %v1987 = vpop.f32.mrf.mxu0
      %1988 = vmatprep.mubr.f32.mxu0 0.0
      %1989 = vmatmul.mubr.f32.gmra.mxu0 %v1607
      %v1990 = vpop.f32.mrf.mxu0
      %v1991 = vadd.f32 %v1794, %v1990
      %v1992 = vpop.f32.mrf.mxu0
      %1993 = vmatprep.mubr.f32.mxu0 0.0
      %1994 = vmatmul.mubr.f32.gmra.mxu0 %v1610
      %v1995 = vpop.f32.mrf.mxu0
      %v1996 = vadd.f32 %v1799, %v1995
      %v1997 = vpop.f32.mrf.mxu0
      %1998 = vmatprep.mubr.f32.mxu0 0.0
      %1999 = vmatmul.mubr.f32.gmra.mxu0 %v1613
      %v2000 = vpop.f32.mrf.mxu0
      %v2001 = vadd.f32 %v1804, %v2000
      %v2002 = vpop.f32.mrf.mxu0
      %2003 = vmatprep.mubr.f32.mxu0 0.0
      %2004 = vmatmul.mubr.f32.gmra.mxu0 %v1616
      %v2005 = vpop.f32.mrf.mxu0
      %v2006 = vadd.f32 %v1809, %v2005
      %v2007 = vpop.f32.mrf.mxu0
      %2008 = vmatprep.mubr.f32.mxu0 0.0
      %2009 = vmatmul.mubr.f32.gmra.mxu0 %v1619
      %v2010 = vpop.f32.mrf.mxu0
      %v2011 = vadd.f32 %v1814, %v2010
      %v2012 = vpop.f32.mrf.mxu0
      %2013 = vmatprep.mubr.f32.mxu0 0.0
      %2014 = vmatmul.mubr.f32.gmra.mxu0 %v1622
      %v2015 = vpop.f32.mrf.mxu0
      %v2016 = vadd.f32 %v1819, %v2015
      %v2017 = vpop.f32.mrf.mxu0
      %2018 = vdwg.mxu0
      %v2019 = vld [vmem:[#allocation3 + $0x30] sm:$0xff]
      %v2020 = vld [vmem:[#allocation3 + $0x38] sm:$0xff]
      %v2021 = vld [vmem:[#allocation3 + $0x40] sm:$0xff]
      %v2022 = vld [vmem:[#allocation3 + $0x48] sm:$0xff]
      %v2023 = vld [vmem:[#allocation3 + $0x50] sm:$0xff]
      %v2024 = vld [vmem:[#allocation3 + $0x58] sm:$0xff]
      %v2025 = vld [vmem:[#allocation3 + $0x60] sm:$0xff]
      %v2026 = vld [vmem:[#allocation3 + $0x68] sm:$0xff]
      %v2027 = vld [vmem:[#allocation3 + $0x70] sm:$0xff]
      %v2028 = vld [vmem:[#allocation3 + $0x78] sm:$0xff]
      %v2029 = vld [vmem:[#allocation3 + $0x80] sm:$0xff]
      %v2030 = vld [vmem:[#allocation3 + $0x88] sm:$0xff]
      %v2031 = vld [vmem:[#allocation3 + $0x90] sm:$0xff]
      %v2032 = vld [vmem:[#allocation3 + $0x98] sm:$0xff]
      %v2033 = vld [vmem:[#allocation3 + $0xa0] sm:$0xff]
      %v2034 = vld [vmem:[#allocation3 + $0xa8] sm:$0xff]
      %v2035 = vld [vmem:[#allocation3 + $0xb0] sm:$0xff]
      %v2036 = vld [vmem:[#allocation3 + $0xb8] sm:$0xff]
      %v2037 = vld [vmem:[#allocation3 + $0xc0] sm:$0xff]
      %v2038 = vld [vmem:[#allocation3 + $0xc8] sm:$0xff]
      %v2039 = vld [vmem:[#allocation3 + $0xd0] sm:$0xff]
      %v2040 = vld [vmem:[#allocation3 + $0xd8] sm:$0xff]
      %v2041 = vld [vmem:[#allocation3 + $0xe0] sm:$0xff]
      %v2042 = vld [vmem:[#allocation3 + $0xe8] sm:$0xff]
      %s2043 = scalar_lea.vmem %s3, 32
      %v2044 = vld [vmem:[%s2043] sm:$0xff]
      %v2045 = vld [vmem:[%s2043 + $0x8] sm:$0xf]
      %v2047 = vsel %vm1498, %v2019, 0
      %v2050 = vsel %vm1498, %v2020, 0
      %v2053 = vsel %vm1498, %v2021, 0
      %v2056 = vsel %vm1498, %v2022, 0
      %v2059 = vsel %vm1498, %v2023, 0
      %v2062 = vsel %vm1498, %v2024, 0
      %v2065 = vsel %vm1498, %v2025, 0
      %v2068 = vsel %vm1498, %v2026, 0
      %v2071 = vsel %vm1498, %v2027, 0
      %v2074 = vsel %vm1498, %v2028, 0
      %v2077 = vsel %vm1498, %v2029, 0
      %v2080 = vsel %vm1498, %v2030, 0
      %v2083 = vsel %vm1498, %v2031, 0
      %v2086 = vsel %vm1498, %v2032, 0
      %v2089 = vsel %vm1498, %v2033, 0
      %v2092 = vsel %vm1498, %v2034, 0
      %v2095 = vsel %vm1498, %v2035, 0
      %v2098 = vsel %vm1498, %v2036, 0
      %v2101 = vsel %vm1498, %v2037, 0
      %v2104 = vsel %vm1498, %v2038, 0
      %v2107 = vsel %vm1498, %v2039, 0
      %v2110 = vsel %vm1498, %v2040, 0
      %v2113 = vsel %vm1498, %v2041, 0
      %v2116 = vsel %vm1498, %v2042, 0
      %v2119 = vsel %vm1633, %v2045, 0
      %2121 = vmatprep.subr.mxu0 0.0
      %2122 = vmatpush1.msra.mxu0 0.0
      %2123 = vmatprep.subr.mxu0 0.0
      %2124 = vmatpush1.msra.mxu0 0.0
      %2125 = vmatprep.subr.mxu0 0.0
      %2126 = vmatpush1.msra.mxu0 0.0
      %2127 = vmatprep.subr.mxu0 0.0
      %2128 = vmatpush1.msra.mxu0 0.0
      %2129 = vmatprep.subr.mxu0 0.0
      %2130 = vmatpush1.msra.mxu0 0.0
      %2131 = vmatprep.subr.mxu0 0.0
      %2132 = vmatpush1.msra.mxu0 0.0
      %2133 = vmatprep.subr.mxu0 0.0
      %2134 = vmatpush1.msra.mxu0 0.0
      %2135 = vmatprep.subr.mxu0 0.0
      %2136 = vmatpush1.msra.mxu0 0.0
      %2137 = vmatprep.subr.mxu0 0.0
      %2138 = vmatpush1.msra.mxu0 0.0
      %2139 = vmatprep.subr.mxu0 0.0
      %2140 = vmatpush1.msra.mxu0 0.0
      %2141 = vmatprep.subr.mxu0 0.0
      %2142 = vmatpush1.msra.mxu0 0.0
      %2143 = vmatprep.subr.mxu0 0.0
      %2144 = vmatpush1.msra.mxu0 0.0
      %2145 = vmatprep.subr.mxu0 0.0
      %2146 = vmatpush1.msra.mxu0 0.0
      %2147 = vmatprep.subr.mxu0 0.0
      %2148 = vmatpush1.msra.mxu0 0.0
      %2149 = vmatprep.subr.mxu0 0.0
      %2150 = vmatpush1.msra.mxu0 %v2119
      %2151 = vmatprep.subr.mxu0 0.0
      %2152 = vmatpush1.msra.mxu0 %v2044
      %2153 = vmatprep.subr.mxu0 0.0
      %2154 = vmatpush2.msra.mxu0 0.0
      %2155 = vmatprep.subr.mxu0 0.0
      %2156 = vmatpush2.msra.mxu0 0.0
      %2157 = vmatprep.subr.mxu0 0.0
      %2158 = vmatpush2.msra.mxu0 0.0
      %2159 = vmatprep.subr.mxu0 0.0
      %2160 = vmatpush2.msra.mxu0 0.0
      %2161 = vmatprep.subr.mxu0 0.0
      %2162 = vmatpush2.msra.mxu0 0.0
      %2163 = vmatprep.subr.mxu0 0.0
      %2164 = vmatpush2.msra.mxu0 0.0
      %2165 = vmatprep.subr.mxu0 0.0
      %2166 = vmatpush2.msra.mxu0 0.0
      %2167 = vmatprep.subr.mxu0 0.0
      %2168 = vmatpush2.msra.mxu0 0.0
      %2169 = vmatprep.subr.mxu0 0.0
      %2170 = vmatpush2.msra.mxu0 0.0
      %2171 = vmatprep.subr.mxu0 0.0
      %2172 = vmatpush2.msra.mxu0 0.0
      %2173 = vmatprep.subr.mxu0 0.0
      %2174 = vmatpush2.msra.mxu0 0.0
      %2175 = vmatprep.subr.mxu0 0.0
      %2176 = vmatpush2.msra.mxu0 0.0
      %2177 = vmatprep.subr.mxu0 0.0
      %2178 = vmatpush2.msra.mxu0 0.0
      %2179 = vmatprep.subr.mxu0 0.0
      %2180 = vmatpush2.msra.mxu0 0.0
      %2181 = vmatprep.subr.mxu0 0.0
      %2182 = vmatpush2.msra.mxu0 0.0
      %2183 = vmatprep.subr.mxu0 0.0
      %2184 = vmatpush2.msra.mxu0 0.0
      %2185 = vmatprep.mubr.f32.mxu0 0.0
      %2186 = vmatmul.mubr.f32.gmra.mxu0 %v2047
      %v2187 = vpop.f32.mrf.mxu0
      %v2188 = vadd.f32 0.0, %v2187
      %v2189 = vpop.f32.mrf.mxu0
      %2190 = vmatprep.mubr.f32.mxu0 0.0
      %2191 = vmatmul.mubr.f32.gmra.mxu0 %v2050
      %v2192 = vpop.f32.mrf.mxu0
      %v2193 = vadd.f32 0.0, %v2192
      %v2194 = vpop.f32.mrf.mxu0
      %2195 = vmatprep.mubr.f32.mxu0 0.0
      %2196 = vmatmul.mubr.f32.gmra.mxu0 %v2053
      %v2197 = vpop.f32.mrf.mxu0
      %v2198 = vadd.f32 0.0, %v2197
      %v2199 = vpop.f32.mrf.mxu0
      %2200 = vmatprep.mubr.f32.mxu0 0.0
      %2201 = vmatmul.mubr.f32.gmra.mxu0 %v2056
      %v2202 = vpop.f32.mrf.mxu0
      %v2203 = vadd.f32 0.0, %v2202
      %v2204 = vpop.f32.mrf.mxu0
      %2205 = vmatprep.mubr.f32.mxu0 0.0
      %2206 = vmatmul.mubr.f32.gmra.mxu0 %v2059
      %v2207 = vpop.f32.mrf.mxu0
      %v2208 = vadd.f32 0.0, %v2207
      %v2209 = vpop.f32.mrf.mxu0
      %2210 = vmatprep.mubr.f32.mxu0 0.0
      %2211 = vmatmul.mubr.f32.gmra.mxu0 %v2062
      %v2212 = vpop.f32.mrf.mxu0
      %v2213 = vadd.f32 0.0, %v2212
      %v2214 = vpop.f32.mrf.mxu0
      %2215 = vmatprep.mubr.f32.mxu0 0.0
      %2216 = vmatmul.mubr.f32.gmra.mxu0 %v2065
      %v2217 = vpop.f32.mrf.mxu0
      %v2218 = vadd.f32 0.0, %v2217
      %v2219 = vpop.f32.mrf.mxu0
      %2220 = vmatprep.mubr.f32.mxu0 0.0
      %2221 = vmatmul.mubr.f32.gmra.mxu0 %v2068
      %v2222 = vpop.f32.mrf.mxu0
      %v2223 = vadd.f32 0.0, %v2222
      %v2224 = vpop.f32.mrf.mxu0
      %2225 = vmatprep.mubr.f32.mxu0 0.0
      %2226 = vmatmul.mubr.f32.gmra.mxu0 %v2071
      %v2227 = vpop.f32.mrf.mxu0
      %v2228 = vadd.f32 0.0, %v2227
      %v2229 = vpop.f32.mrf.mxu0
      %2230 = vmatprep.mubr.f32.mxu0 0.0
      %2231 = vmatmul.mubr.f32.gmra.mxu0 %v2074
      %v2232 = vpop.f32.mrf.mxu0
      %v2233 = vadd.f32 0.0, %v2232
      %v2234 = vpop.f32.mrf.mxu0
      %2235 = vmatprep.mubr.f32.mxu0 0.0
      %2236 = vmatmul.mubr.f32.gmra.mxu0 %v2077
      %v2237 = vpop.f32.mrf.mxu0
      %v2238 = vadd.f32 0.0, %v2237
      %v2239 = vpop.f32.mrf.mxu0
      %2240 = vmatprep.mubr.f32.mxu0 0.0
      %2241 = vmatmul.mubr.f32.gmra.mxu0 %v2080
      %v2242 = vpop.f32.mrf.mxu0
      %v2243 = vadd.f32 0.0, %v2242
      %v2244 = vpop.f32.mrf.mxu0
      %2245 = vmatprep.mubr.f32.mxu0 0.0
      %2246 = vmatmul.mubr.f32.gmra.mxu0 %v2083
      %v2247 = vpop.f32.mrf.mxu0
      %v2248 = vadd.f32 0.0, %v2247
      %v2249 = vpop.f32.mrf.mxu0
      %2250 = vmatprep.mubr.f32.mxu0 0.0
      %2251 = vmatmul.mubr.f32.gmra.mxu0 %v2086
      %v2252 = vpop.f32.mrf.mxu0
      %v2253 = vadd.f32 0.0, %v2252
      %v2254 = vpop.f32.mrf.mxu0
      %2255 = vmatprep.mubr.f32.mxu0 0.0
      %2256 = vmatmul.mubr.f32.gmra.mxu0 %v2089
      %v2257 = vpop.f32.mrf.mxu0
      %v2258 = vadd.f32 0.0, %v2257
      %v2259 = vpop.f32.mrf.mxu0
      %2260 = vmatprep.mubr.f32.mxu0 0.0
      %2261 = vmatmul.mubr.f32.gmra.mxu0 %v2092
      %v2262 = vpop.f32.mrf.mxu0
      %v2263 = vadd.f32 0.0, %v2262
      %v2264 = vpop.f32.mrf.mxu0
      %2265 = vmatprep.mubr.f32.mxu0 0.0
      %2266 = vmatmul.mubr.f32.gmra.mxu0 %v2095
      %v2267 = vpop.f32.mrf.mxu0
      %v2268 = vadd.f32 0.0, %v2267
      %v2269 = vpop.f32.mrf.mxu0
      %2270 = vmatprep.mubr.f32.mxu0 0.0
      %2271 = vmatmul.mubr.f32.gmra.mxu0 %v2098
      %v2272 = vpop.f32.mrf.mxu0
      %v2273 = vadd.f32 0.0, %v2272
      %v2274 = vpop.f32.mrf.mxu0
      %2275 = vmatprep.mubr.f32.mxu0 0.0
      %2276 = vmatmul.mubr.f32.gmra.mxu0 %v2101
      %v2277 = vpop.f32.mrf.mxu0
      %v2278 = vadd.f32 0.0, %v2277
      %v2279 = vpop.f32.mrf.mxu0
      %2280 = vmatprep.mubr.f32.mxu0 0.0
      %2281 = vmatmul.mubr.f32.gmra.mxu0 %v2104
      %v2282 = vpop.f32.mrf.mxu0
      %v2283 = vadd.f32 0.0, %v2282
      %v2284 = vpop.f32.mrf.mxu0
      %2285 = vmatprep.mubr.f32.mxu0 0.0
      %2286 = vmatmul.mubr.f32.gmra.mxu0 %v2107
      %v2287 = vpop.f32.mrf.mxu0
      %v2288 = vadd.f32 0.0, %v2287
      %v2289 = vpop.f32.mrf.mxu0
      %2290 = vmatprep.mubr.f32.mxu0 0.0
      %2291 = vmatmul.mubr.f32.gmra.mxu0 %v2110
      %v2292 = vpop.f32.mrf.mxu0
      %v2293 = vadd.f32 0.0, %v2292
      %v2294 = vpop.f32.mrf.mxu0
      %2295 = vmatprep.mubr.f32.mxu0 0.0
      %2296 = vmatmul.mubr.f32.gmra.mxu0 %v2113
      %v2297 = vpop.f32.mrf.mxu0
      %v2298 = vadd.f32 0.0, %v2297
      %v2299 = vpop.f32.mrf.mxu0
      %2300 = vmatprep.mubr.f32.mxu0 0.0
      %2301 = vmatmul.mubr.f32.gmra.mxu0 %v2116
      %v2302 = vpop.f32.mrf.mxu0
      %v2303 = vadd.f32 0.0, %v2302
      %v2304 = vpop.f32.mrf.mxu0
      %2305 = vdwg.mxu0
      %v2306 = vadd.f32 %v1901, %v2188
      %v2307 = vadd.f32 %v1906, %v2193
      %v2308 = vadd.f32 %v1911, %v2198
      %v2309 = vadd.f32 %v1916, %v2203
      %v2310 = vadd.f32 %v1921, %v2208
      %v2311 = vadd.f32 %v1926, %v2213
      %v2312 = vadd.f32 %v1931, %v2218
      %v2313 = vadd.f32 %v1936, %v2223
      %v2314 = vadd.f32 %v1941, %v2228
      %v2315 = vadd.f32 %v1946, %v2233
      %v2316 = vadd.f32 %v1951, %v2238
      %v2317 = vadd.f32 %v1956, %v2243
      %v2318 = vadd.f32 %v1961, %v2248
      %v2319 = vadd.f32 %v1966, %v2253
      %v2320 = vadd.f32 %v1971, %v2258
      %v2321 = vadd.f32 %v1976, %v2263
      %v2322 = vadd.f32 %v1981, %v2268
      %v2323 = vadd.f32 %v1986, %v2273
      %v2324 = vadd.f32 %v1991, %v2278
      %v2325 = vadd.f32 %v1996, %v2283
      %v2326 = vadd.f32 %v2001, %v2288
      %v2327 = vadd.f32 %v2006, %v2293
      %v2328 = vadd.f32 %v2011, %v2298
      %v2329 = vadd.f32 %v2016, %v2303
      %v2330 = vld [vmem:[%s4] sm:$0x1]
      %v2332 = vlaneseq
      %v2333 = vshrl.u32 %v2332, 7
      %v2334 = vsub.s32 0, %v2333
      %v2335 = vrot.slane %v2330, %v2334
      %v2337 = vadd.f32 %v2306, %v2335
      %v2338 = vadd.f32 %v2307, %v2335
      %v2339 = vadd.f32 %v2308, %v2335
      %v2340 = vadd.f32 %v2309, %v2335
      %v2341 = vadd.f32 %v2310, %v2335
      %v2342 = vadd.f32 %v2311, %v2335
      %v2343 = vadd.f32 %v2312, %v2335
      %v2344 = vadd.f32 %v2313, %v2335
      %v2345 = vadd.f32 %v2314, %v2335
      %v2346 = vadd.f32 %v2315, %v2335
      %v2347 = vadd.f32 %v2316, %v2335
      %v2348 = vadd.f32 %v2317, %v2335
      %v2349 = vadd.f32 %v2318, %v2335
      %v2350 = vadd.f32 %v2319, %v2335
      %v2351 = vadd.f32 %v2320, %v2335
      %v2352 = vadd.f32 %v2321, %v2335
      %v2353 = vadd.f32 %v2322, %v2335
      %v2354 = vadd.f32 %v2323, %v2335
      %v2355 = vadd.f32 %v2324, %v2335
      %v2356 = vadd.f32 %v2325, %v2335
      %v2357 = vadd.f32 %v2326, %v2335
      %v2358 = vadd.f32 %v2327, %v2335
      %v2359 = vadd.f32 %v2328, %v2335
      %v2360 = vadd.f32 %v2329, %v2335
      %v2361 = vmax.f32 %v2337, 0.0
      %v2362 = vmax.f32 %v2338, 0.0
      %v2363 = vmax.f32 %v2339, 0.0
      %v2364 = vmax.f32 %v2340, 0.0
      %v2365 = vmax.f32 %v2341, 0.0
      %v2366 = vmax.f32 %v2342, 0.0
      %v2367 = vmax.f32 %v2343, 0.0
      %v2368 = vmax.f32 %v2344, 0.0
      %v2369 = vmax.f32 %v2345, 0.0
      %v2370 = vmax.f32 %v2346, 0.0
      %v2371 = vmax.f32 %v2347, 0.0
      %v2372 = vmax.f32 %v2348, 0.0
      %v2373 = vmax.f32 %v2349, 0.0
      %v2374 = vmax.f32 %v2350, 0.0
      %v2375 = vmax.f32 %v2351, 0.0
      %v2376 = vmax.f32 %v2352, 0.0
      %v2377 = vmax.f32 %v2353, 0.0
      %v2378 = vmax.f32 %v2354, 0.0
      %v2379 = vmax.f32 %v2355, 0.0
      %v2380 = vmax.f32 %v2356, 0.0
      %v2381 = vmax.f32 %v2357, 0.0
      %v2382 = vmax.f32 %v2358, 0.0
      %v2383 = vmax.f32 %v2359, 0.0
      %v2384 = vmax.f32 %v2360, 0.0
      %v2385 = vld [vmem:[%s5] sm:$0xf]
      %v2386 = vld [vmem:[%s305 + $0x18] sm:$0xff]
      %v2387 = vld [vmem:[%s305 + $0x20] sm:$0xff]
      %v2388 = vld [vmem:[%s305 + $0x28] sm:$0xff]
      %v2389 = vld [vmem:[%s305 + $0x30] sm:$0xff]
      %v2390 = vld [vmem:[%s305 + $0x38] sm:$0xff]
      %v2391 = vld [vmem:[%s305 + $0x40] sm:$0xff]
      %v2392 = vld [vmem:[%s305 + $0x48] sm:$0xff]
      %v2393 = vld [vmem:[%s305 + $0x50] sm:$0xff]
      %v2394 = vld [vmem:[%s305 + $0x58] sm:$0xff]
      %v2395 = vld [vmem:[%s305 + $0x60] sm:$0xff]
      %v2396 = vld [vmem:[%s305 + $0x68] sm:$0xff]
      %v2397 = vld [vmem:[%s305 + $0x70] sm:$0xff]
      %v2398 = vld [vmem:[%s305 + $0x78] sm:$0xff]
      %v2399 = vld [vmem:[%s305 + $0x80] sm:$0xff]
      %v2400 = vld [vmem:[%s305 + $0x88] sm:$0xff]
      %v2401 = vld [vmem:[%s305 + $0x90] sm:$0xff]
      %v2402 = vld [vmem:[%s305 + $0x98] sm:$0xff]
      %v2403 = vld [vmem:[%s305 + $0xa0] sm:$0xff]
      %v2404 = vld [vmem:[%s305 + $0xa8] sm:$0xff]
      %v2405 = vld [vmem:[%s305 + $0xb0] sm:$0xff]
      %v2406 = vld [vmem:[%s305 + $0xb8] sm:$0xff]
      %v2407 = vld [vmem:[%s305 + $0xc0] sm:$0xff]
      %v2408 = vld [vmem:[%s305 + $0xc8] sm:$0xff]
      %v2409 = vld [vmem:[%s305 + $0xd0] sm:$0xff]
      %v2410 = vld [vmem:[%s6] sm:$0x1]
      %v2412 = vlaneseq
      %v2413 = vshrl.u32 %v2412, 7
      %v2414 = vsub.s32 0, %v2413
      %v2415 = vrot.slane %v2410, %v2414
      %v2418 = vsel %vm1104, %v2361, 0
      %v2421 = vsel %vm1104, %v2362, 0
      %v2424 = vsel %vm1104, %v2363, 0
      %v2427 = vsel %vm1104, %v2364, 0
      %v2430 = vsel %vm1104, %v2365, 0
      %v2433 = vsel %vm1104, %v2366, 0
      %v2436 = vsel %vm1104, %v2367, 0
      %v2439 = vsel %vm1104, %v2368, 0
      %v2442 = vsel %vm1104, %v2369, 0
      %v2445 = vsel %vm1104, %v2370, 0
      %v2448 = vsel %vm1104, %v2371, 0
      %v2451 = vsel %vm1104, %v2372, 0
      %v2454 = vsel %vm1104, %v2373, 0
      %v2457 = vsel %vm1104, %v2374, 0
      %v2460 = vsel %vm1104, %v2375, 0
      %v2463 = vsel %vm1104, %v2376, 0
      %v2466 = vsel %vm1104, %v2377, 0
      %v2469 = vsel %vm1104, %v2378, 0
      %v2472 = vsel %vm1104, %v2379, 0
      %v2475 = vsel %vm1104, %v2380, 0
      %v2478 = vsel %vm1104, %v2381, 0
      %v2481 = vsel %vm1104, %v2382, 0
      %v2484 = vsel %vm1104, %v2383, 0
      %v2487 = vsel %vm1104, %v2384, 0
      %v2490 = vsel %vm1633, %v2385, 0
      %2492 = vmatprep.subr.mxu0 0.0
      %2493 = vmatpush1.msra.mxu0 0.0
      %2494 = vmatprep.subr.mxu0 0.0
      %2495 = vmatpush1.msra.mxu0 0.0
      %2496 = vmatprep.subr.mxu0 0.0
      %2497 = vmatpush1.msra.mxu0 0.0
      %2498 = vmatprep.subr.mxu0 0.0
      %2499 = vmatpush1.msra.mxu0 0.0
      %2500 = vmatprep.subr.mxu0 0.0
      %2501 = vmatpush1.msra.mxu0 0.0
      %2502 = vmatprep.subr.mxu0 0.0
      %2503 = vmatpush1.msra.mxu0 0.0
      %2504 = vmatprep.subr.mxu0 0.0
      %2505 = vmatpush1.msra.mxu0 0.0
      %2506 = vmatprep.subr.mxu0 0.0
      %2507 = vmatpush1.msra.mxu0 0.0
      %2508 = vmatprep.subr.mxu0 0.0
      %2509 = vmatpush1.msra.mxu0 0.0
      %2510 = vmatprep.subr.mxu0 0.0
      %2511 = vmatpush1.msra.mxu0 0.0
      %2512 = vmatprep.subr.mxu0 0.0
      %2513 = vmatpush1.msra.mxu0 0.0
      %2514 = vmatprep.subr.mxu0 0.0
      %2515 = vmatpush1.msra.mxu0 0.0
      %2516 = vmatprep.subr.mxu0 0.0
      %2517 = vmatpush1.msra.mxu0 0.0
      %2518 = vmatprep.subr.mxu0 0.0
      %2519 = vmatpush1.msra.mxu0 0.0
      %2520 = vmatprep.subr.mxu0 0.0
      %2521 = vmatpush1.msra.mxu0 0.0
      %2522 = vmatprep.subr.mxu0 0.0
      %2523 = vmatpush1.msra.mxu0 %v2490
      %2524 = vmatprep.subr.mxu0 0.0
      %2525 = vmatpush2.msra.mxu0 0.0
      %2526 = vmatprep.subr.mxu0 0.0
      %2527 = vmatpush2.msra.mxu0 0.0
      %2528 = vmatprep.subr.mxu0 0.0
      %2529 = vmatpush2.msra.mxu0 0.0
      %2530 = vmatprep.subr.mxu0 0.0
      %2531 = vmatpush2.msra.mxu0 0.0
      %2532 = vmatprep.subr.mxu0 0.0
      %2533 = vmatpush2.msra.mxu0 0.0
      %2534 = vmatprep.subr.mxu0 0.0
      %2535 = vmatpush2.msra.mxu0 0.0
      %2536 = vmatprep.subr.mxu0 0.0
      %2537 = vmatpush2.msra.mxu0 0.0
      %2538 = vmatprep.subr.mxu0 0.0
      %2539 = vmatpush2.msra.mxu0 0.0
      %2540 = vmatprep.subr.mxu0 0.0
      %2541 = vmatpush2.msra.mxu0 0.0
      %2542 = vmatprep.subr.mxu0 0.0
      %2543 = vmatpush2.msra.mxu0 0.0
      %2544 = vmatprep.subr.mxu0 0.0
      %2545 = vmatpush2.msra.mxu0 0.0
      %2546 = vmatprep.subr.mxu0 0.0
      %2547 = vmatpush2.msra.mxu0 0.0
      %2548 = vmatprep.subr.mxu0 0.0
      %2549 = vmatpush2.msra.mxu0 0.0
      %2550 = vmatprep.subr.mxu0 0.0
      %2551 = vmatpush2.msra.mxu0 0.0
      %2552 = vmatprep.subr.mxu0 0.0
      %2553 = vmatpush2.msra.mxu0 0.0
      %2554 = vmatprep.subr.mxu0 0.0
      %2555 = vmatpush2.msra.mxu0 0.0
      %2556 = vmatprep.mubr.f32.mxu0 0.0
      %2557 = vmatmul.mubr.f32.gmra.mxu0 %v2418
      %v2558 = vpop.f32.mrf.mxu0
      %v2559 = vadd.f32 %v2415, %v2558
      %v2560 = vpop.f32.mrf.mxu0
      %2561 = vmatprep.mubr.f32.mxu0 0.0
      %2562 = vmatmul.mubr.f32.gmra.mxu0 %v2421
      %v2563 = vpop.f32.mrf.mxu0
      %v2564 = vadd.f32 %v2415, %v2563
      %v2565 = vpop.f32.mrf.mxu0
      %2566 = vmatprep.mubr.f32.mxu0 0.0
      %2567 = vmatmul.mubr.f32.gmra.mxu0 %v2424
      %v2568 = vpop.f32.mrf.mxu0
      %v2569 = vadd.f32 %v2415, %v2568
      %v2570 = vpop.f32.mrf.mxu0
      %2571 = vmatprep.mubr.f32.mxu0 0.0
      %2572 = vmatmul.mubr.f32.gmra.mxu0 %v2427
      %v2573 = vpop.f32.mrf.mxu0
      %v2574 = vadd.f32 %v2415, %v2573
      %v2575 = vpop.f32.mrf.mxu0
      %2576 = vmatprep.mubr.f32.mxu0 0.0
      %2577 = vmatmul.mubr.f32.gmra.mxu0 %v2430
      %v2578 = vpop.f32.mrf.mxu0
      %v2579 = vadd.f32 %v2415, %v2578
      %v2580 = vpop.f32.mrf.mxu0
      %2581 = vmatprep.mubr.f32.mxu0 0.0
      %2582 = vmatmul.mubr.f32.gmra.mxu0 %v2433
      %v2583 = vpop.f32.mrf.mxu0
      %v2584 = vadd.f32 %v2415, %v2583
      %v2585 = vpop.f32.mrf.mxu0
      %2586 = vmatprep.mubr.f32.mxu0 0.0
      %2587 = vmatmul.mubr.f32.gmra.mxu0 %v2436
      %v2588 = vpop.f32.mrf.mxu0
      %v2589 = vadd.f32 %v2415, %v2588
      %v2590 = vpop.f32.mrf.mxu0
      %2591 = vmatprep.mubr.f32.mxu0 0.0
      %2592 = vmatmul.mubr.f32.gmra.mxu0 %v2439
      %v2593 = vpop.f32.mrf.mxu0
      %v2594 = vadd.f32 %v2415, %v2593
      %v2595 = vpop.f32.mrf.mxu0
      %2596 = vmatprep.mubr.f32.mxu0 0.0
      %2597 = vmatmul.mubr.f32.gmra.mxu0 %v2442
      %v2598 = vpop.f32.mrf.mxu0
      %v2599 = vadd.f32 %v2415, %v2598
      %v2600 = vpop.f32.mrf.mxu0
      %2601 = vmatprep.mubr.f32.mxu0 0.0
      %2602 = vmatmul.mubr.f32.gmra.mxu0 %v2445
      %v2603 = vpop.f32.mrf.mxu0
      %v2604 = vadd.f32 %v2415, %v2603
      %v2605 = vpop.f32.mrf.mxu0
      %2606 = vmatprep.mubr.f32.mxu0 0.0
      %2607 = vmatmul.mubr.f32.gmra.mxu0 %v2448
      %v2608 = vpop.f32.mrf.mxu0
      %v2609 = vadd.f32 %v2415, %v2608
      %v2610 = vpop.f32.mrf.mxu0
      %2611 = vmatprep.mubr.f32.mxu0 0.0
      %2612 = vmatmul.mubr.f32.gmra.mxu0 %v2451
      %v2613 = vpop.f32.mrf.mxu0
      %v2614 = vadd.f32 %v2415, %v2613
      %v2615 = vpop.f32.mrf.mxu0
      %2616 = vmatprep.mubr.f32.mxu0 0.0
      %2617 = vmatmul.mubr.f32.gmra.mxu0 %v2454
      %v2618 = vpop.f32.mrf.mxu0
      %v2619 = vadd.f32 %v2415, %v2618
      %v2620 = vpop.f32.mrf.mxu0
      %2621 = vmatprep.mubr.f32.mxu0 0.0
      %2622 = vmatmul.mubr.f32.gmra.mxu0 %v2457
      %v2623 = vpop.f32.mrf.mxu0
      %v2624 = vadd.f32 %v2415, %v2623
      %v2625 = vpop.f32.mrf.mxu0
      %2626 = vmatprep.mubr.f32.mxu0 0.0
      %2627 = vmatmul.mubr.f32.gmra.mxu0 %v2460
      %v2628 = vpop.f32.mrf.mxu0
      %v2629 = vadd.f32 %v2415, %v2628
      %v2630 = vpop.f32.mrf.mxu0
      %2631 = vmatprep.mubr.f32.mxu0 0.0
      %2632 = vmatmul.mubr.f32.gmra.mxu0 %v2463
      %v2633 = vpop.f32.mrf.mxu0
      %v2634 = vadd.f32 %v2415, %v2633
      %v2635 = vpop.f32.mrf.mxu0
      %2636 = vmatprep.mubr.f32.mxu0 0.0
      %2637 = vmatmul.mubr.f32.gmra.mxu0 %v2466
      %v2638 = vpop.f32.mrf.mxu0
      %v2639 = vadd.f32 %v2415, %v2638
      %v2640 = vpop.f32.mrf.mxu0
      %2641 = vmatprep.mubr.f32.mxu0 0.0
      %2642 = vmatmul.mubr.f32.gmra.mxu0 %v2469
      %v2643 = vpop.f32.mrf.mxu0
      %v2644 = vadd.f32 %v2415, %v2643
      %v2645 = vpop.f32.mrf.mxu0
      %2646 = vmatprep.mubr.f32.mxu0 0.0
      %2647 = vmatmul.mubr.f32.gmra.mxu0 %v2472
      %v2648 = vpop.f32.mrf.mxu0
      %v2649 = vadd.f32 %v2415, %v2648
      %v2650 = vpop.f32.mrf.mxu0
      %2651 = vmatprep.mubr.f32.mxu0 0.0
      %2652 = vmatmul.mubr.f32.gmra.mxu0 %v2475
      %v2653 = vpop.f32.mrf.mxu0
      %v2654 = vadd.f32 %v2415, %v2653
      %v2655 = vpop.f32.mrf.mxu0
      %2656 = vmatprep.mubr.f32.mxu0 0.0
      %2657 = vmatmul.mubr.f32.gmra.mxu0 %v2478
      %v2658 = vpop.f32.mrf.mxu0
      %v2659 = vadd.f32 %v2415, %v2658
      %v2660 = vpop.f32.mrf.mxu0
      %2661 = vmatprep.mubr.f32.mxu0 0.0
      %2662 = vmatmul.mubr.f32.gmra.mxu0 %v2481
      %v2663 = vpop.f32.mrf.mxu0
      %v2664 = vadd.f32 %v2415, %v2663
      %v2665 = vpop.f32.mrf.mxu0
      %2666 = vmatprep.mubr.f32.mxu0 0.0
      %2667 = vmatmul.mubr.f32.gmra.mxu0 %v2484
      %v2668 = vpop.f32.mrf.mxu0
      %v2669 = vadd.f32 %v2415, %v2668
      %v2670 = vpop.f32.mrf.mxu0
      %2671 = vmatprep.mubr.f32.mxu0 0.0
      %2672 = vmatmul.mubr.f32.gmra.mxu0 %v2487
      %v2673 = vpop.f32.mrf.mxu0
      %v2674 = vadd.f32 %v2415, %v2673
      %v2675 = vpop.f32.mrf.mxu0
      %2676 = vdwg.mxu0
      %v2677 = vadd.f32 %v2559, %v2386
      %v2678 = vadd.f32 %v2564, %v2387
      %v2679 = vadd.f32 %v2569, %v2388
      %v2680 = vadd.f32 %v2574, %v2389
      %v2681 = vadd.f32 %v2579, %v2390
      %v2682 = vadd.f32 %v2584, %v2391
      %v2683 = vadd.f32 %v2589, %v2392
      %v2684 = vadd.f32 %v2594, %v2393
      %v2685 = vadd.f32 %v2599, %v2394
      %v2686 = vadd.f32 %v2604, %v2395
      %v2687 = vadd.f32 %v2609, %v2396
      %v2688 = vadd.f32 %v2614, %v2397
      %v2689 = vadd.f32 %v2619, %v2398
      %v2690 = vadd.f32 %v2624, %v2399
      %v2691 = vadd.f32 %v2629, %v2400
      %v2692 = vadd.f32 %v2634, %v2401
      %v2693 = vadd.f32 %v2639, %v2402
      %v2694 = vadd.f32 %v2644, %v2403
      %v2695 = vadd.f32 %v2649, %v2404
      %v2696 = vadd.f32 %v2654, %v2405
      %v2697 = vadd.f32 %v2659, %v2406
      %v2698 = vadd.f32 %v2664, %v2407
      %v2699 = vadd.f32 %v2669, %v2408
      %v2700 = vadd.f32 %v2674, %v2409
      %v2701 = vmax.f32 %v2677, 0.0
      %v2702 = vmax.f32 %v2678, 0.0
      %v2703 = vmax.f32 %v2679, 0.0
      %v2704 = vmax.f32 %v2680, 0.0
      %v2705 = vmax.f32 %v2681, 0.0
      %v2706 = vmax.f32 %v2682, 0.0
      %v2707 = vmax.f32 %v2683, 0.0
      %v2708 = vmax.f32 %v2684, 0.0
      %v2709 = vmax.f32 %v2685, 0.0
      %v2710 = vmax.f32 %v2686, 0.0
      %v2711 = vmax.f32 %v2687, 0.0
      %v2712 = vmax.f32 %v2688, 0.0
      %v2713 = vmax.f32 %v2689, 0.0
      %v2714 = vmax.f32 %v2690, 0.0
      %v2715 = vmax.f32 %v2691, 0.0
      %v2716 = vmax.f32 %v2692, 0.0
      %v2717 = vmax.f32 %v2693, 0.0
      %v2718 = vmax.f32 %v2694, 0.0
      %v2719 = vmax.f32 %v2695, 0.0
      %v2720 = vmax.f32 %v2696, 0.0
      %v2721 = vmax.f32 %v2697, 0.0
      %v2722 = vmax.f32 %v2698, 0.0
      %v2723 = vmax.f32 %v2699, 0.0
      %v2724 = vmax.f32 %v2700, 0.0
      %2725 = vst.msk [vmem:[%s314] sm:$0xff] %vm354, %v2701
      %2726 = vst.msk [vmem:[%s314 + $0x8] sm:$0xff] %vm354, %v2702
      %2727 = vst.msk [vmem:[%s314 + $0x10] sm:$0xff] %vm354, %v2703
      %2728 = vst.msk [vmem:[%s314 + $0x18] sm:$0xff] %vm354, %v2704
      %2729 = vst.msk [vmem:[%s314 + $0x20] sm:$0xff] %vm354, %v2705
      %2730 = vst.msk [vmem:[%s314 + $0x28] sm:$0xff] %vm354, %v2706
      %2731 = vst.msk [vmem:[%s314 + $0x30] sm:$0xff] %vm354, %v2707
      %2732 = vst.msk [vmem:[%s314 + $0x38] sm:$0xff] %vm354, %v2708
      %2733 = vst.msk [vmem:[%s314 + $0x40] sm:$0xff] %vm354, %v2709
      %2734 = vst.msk [vmem:[%s314 + $0x48] sm:$0xff] %vm354, %v2710
      %2735 = vst.msk [vmem:[%s314 + $0x50] sm:$0xff] %vm354, %v2711
      %2736 = vst.msk [vmem:[%s314 + $0x58] sm:$0xff] %vm354, %v2712
      %2737 = vst.msk [vmem:[%s314 + $0x60] sm:$0xff] %vm354, %v2713
      %2738 = vst.msk [vmem:[%s314 + $0x68] sm:$0xff] %vm354, %v2714
      %2739 = vst.msk [vmem:[%s314 + $0x70] sm:$0xff] %vm354, %v2715
      %2740 = vst.msk [vmem:[%s314 + $0x78] sm:$0xff] %vm354, %v2716
      %2741 = vst.msk [vmem:[%s314 + $0x80] sm:$0xff] %vm354, %v2717
      %2742 = vst.msk [vmem:[%s314 + $0x88] sm:$0xff] %vm354, %v2718
      %2743 = vst.msk [vmem:[%s314 + $0x90] sm:$0xff] %vm354, %v2719
      %2744 = vst.msk [vmem:[%s314 + $0x98] sm:$0xff] %vm354, %v2720
      %2745 = vst.msk [vmem:[%s314 + $0xa0] sm:$0xff] %vm354, %v2721
      %2746 = vst.msk [vmem:[%s314 + $0xa8] sm:$0xff] %vm354, %v2722
      %2747 = vst.msk [vmem:[%s314 + $0xb0] sm:$0xff] %vm354, %v2723
      %2748 = vst.msk [vmem:[%s314 + $0xb8] sm:$0xff] %vm354, %v2724
      %p2749 = scmp.lt.s32.totalorder %s22, 1
      %s2750 = scalar_select %p2749, %s22, 1
      %p2751 = scmp.lt.s32.totalorder %s23, 1
      %s2752 = scalar_select %p2751, %s23, 1
      %s2753 = smul.addr %s2752, 24
      %s2754 = smul.addr %s2750, 48
      %s2755 = sadd.s32 %s2753, %s2754
      %s2756 = smul.addr %s2755, 8
      %s2757 = scalar_lea.vmem %s7, %s2756
      // Predicated region
      $region49: #{tpu_custom_call.1} parent=47 // pred_check
        %p2758 = pneg %p204
      $region50: #{tpu_custom_call.1} parent=47 // pred_check_branch
        %2760 = sbr.rel (%p2758) target = $region52
      $region51: #{tpu_custom_call.1} parent=47 // pred_region
        _
      $region52: #{tpu_custom_call.1} parent=47 // pred_fallthru
        _
    $region48: #{tpu_custom_call.1} parent=5 // pred_fallthru
      _
    %p2761 = scmp.le.s32.totalorder 2, %s13
    // Predicated region
    $region53: #{tpu_custom_call.1} parent=5 // pred_check
      %p2762 = pneg %p2761
    $region54: #{tpu_custom_call.1} parent=5 // pred_check_branch
      %2764 = sbr.rel (%p2762) target = $region56
    $region55: #{tpu_custom_call.1} parent=5 // pred_region
      %s2765 = ssub.s32 %s13, 2
      // Predicated region
      $region57: #{tpu_custom_call.1} parent=55 // pred_check
        %p2766 = pneg %p210
      $region58: #{tpu_custom_call.1} parent=55 // pred_check_branch
        %2768 = sbr.rel (%p2766) target = $region60
      $region59: #{tpu_custom_call.1} parent=55 // pred_region
        %p2769 = scmp.lt.s32.totalorder %s24, 1
        %s2770 = scalar_select %p2769, %s24, 1
        %p2771 = scmp.lt.s32.totalorder %s25, 1
        %s2772 = scalar_select %p2771, %s25, 1
        %s2773 = smul.addr %s2772, 24
        %s2774 = smul.addr %s2770, 48
        %s2775 = sadd.s32 %s2773, %s2774
        %s2776 = smul.addr %s2775, 8
        %s2777 = scalar_lea.vmem %s7, %s2776
      $region60: #{tpu_custom_call.1} parent=55 // pred_fallthru
        _
    $region56: #{tpu_custom_call.1} parent=5 // pred_fallthru
      _
  $region6: #{tpu_custom_call.1} parent=0 // loop_footer
    %s17 = sadd.s32 1, %s13
  $region7: #{tpu_custom_call.1} parent=0 // loop_footer_branch
    %12 = sbr.rel target = $region3
  $region8: #{tpu_custom_call.1} parent=0 // loop_exit
    _

</llo_original>
